<compile_context>
chip_gen: v7x
topology: tpu7x:2x2x1
jax: 0.10.0
libtpu: 0.0.40
codegen_flags: <defaults>
</compile_context>

<pallas_src>
import functools

import numpy as np
import jax
import jax.numpy as jnp
from jax.experimental import pallas as pl
from jax.experimental.pallas import tpu as pltpu


# ----------------------------- helpers -----------------------------

def _round_up(a: int, b: int) -> int:
    return ((a + b - 1) // b) * b


def _nearest_resize_matrix(out_size: int, in_size: int) -> np.ndarray:
    # torchvision Resize(..., NEAREST) == F.interpolate(mode="nearest"):
    #   src_index = floor(dst_index * in_size / out_size)
    idx = np.floor(np.arange(out_size) * (in_size / float(out_size))).astype(np.int64)
    idx = np.clip(idx, 0, in_size - 1)
    mat = np.zeros((out_size, in_size), np.float32)
    mat[np.arange(out_size), idx] = 1.0
    return mat


# ----------------------------- host-side precompute (glue) -----------------------------

def _build_constants(n_fft, hop, n_freq, n_frames, hs, ws, l_pad):
    """Returns (R, Wre, Wim), L_out.

    R   : (Hs*Ws, F*T)  one-hot nearest-resize (+ implicit HW->(f,t) transpose)
    Wre : (F*T, L_pad)  windowed inverse-rFFT real basis with overlap-add
                        placement, center trim and 1/window-envelope folded in,
                        zero-padded along columns to a multiple of 128.
    Wim : (F*T, L_pad)  same for the imaginary part.
    Row/column ordering of the (f, t) axis is the row-major flatten f*T + t.
    """
    N = n_fft
    assert n_freq == N // 2 + 1, "resized height must equal n_fft//2 + 1 for istft"
    T = n_frames
    n = np.arange(N)
    # torch.hann_window default: periodic
    win = 0.5 * (1.0 - np.cos(2.0 * np.pi * n / N))

    # one-sided inverse rFFT basis (imag of DC / Nyquist bins has zero weight, as irfft)
    k = np.arange(n_freq)
    wgt = np.full((n_freq,), 2.0)
    wgt[0] = 1.0
    wgt[N // 2] = 1.0
    ang = 2.0 * np.pi * np.outer(n, k) / N                    # (N, F)
    Cw = win[:, None] * (wgt[None, :] * np.cos(ang)) / N      # (N, F) real basis, windowed
    Sw = win[:, None] * (-wgt[None, :] * np.sin(ang)) / N     # (N, F) imag basis, windowed

    # overlap-add envelope, center trim
    L_full = N + hop * (T - 1)
    pad = N // 2
    L_out = hop * (T - 1)
    env = np.zeros((L_full,), np.float64)
    for t in range(T):
        env[t * hop:t * hop + N] += win ** 2
    env_trim = env[pad:pad + L_out]
    if np.any(env_trim < 1e-11):
        # mirrors torch.istft's NOLA error instead of silently emitting inf/NaN
        raise ValueError("window envelope has (near-)zeros in output region (NOLA violated)")
    inv_env = 1.0 / env_trim                                  # (L_out,)

    # fold OLA placement + trim + envelope normalization into the basis
    n_idx = (np.arange(L_out)[None, :] + pad) - np.arange(T)[:, None] * hop  # (T, L_out)
    valid = (n_idx >= 0) & (n_idx < N)
    n_clip = np.clip(n_idx, 0, N - 1)
    gain = valid.astype(np.float64) * inv_env[None, :]        # (T, L_out)
    Wre = (Cw[n_clip, :].transpose(2, 0, 1) * gain[None]).reshape(n_freq * T, L_out)
    Wim = (Sw[n_clip, :].transpose(2, 0, 1) * gain[None]).reshape(n_freq * T, L_out)

    # zero-pad output columns to a lane-dense multiple of 128
    Wre = np.pad(Wre, ((0, 0), (0, l_pad - L_out)))
    Wim = np.pad(Wim, ((0, 0), (0, l_pad - L_out)))

    # fused nearest-resize matrix, column order f*T + t
    Rh = _nearest_resize_matrix(n_freq, hs)                   # (F, Hs)
    Rw = _nearest_resize_matrix(T, ws)                        # (T, Ws)
    R = np.kron(Rh, Rw).T                                     # (Hs*Ws, F*T)

    return (jnp.asarray(R, jnp.float32),
            jnp.asarray(Wre, jnp.float32),
            jnp.asarray(Wim, jnp.float32)), L_out


# ------------------------------------- kernel -------------------------------------

def _istft_kernel(x_ref, ph_ref, r_ref, wre_ref, wim_ref, o_ref, *, log):
    # x_ref  : (tile_m, Hs*Ws)  flattened log-magnitude rows (B*C folded into M)
    # ph_ref : (tile_m, F*T)    flattened phase rows (pre-broadcast over channels)
    # r_ref  : (Hs*Ws, F*T)     one-hot nearest-resize matrix (grid-invariant)
    # wre_ref: (F*T, L_pad)     fused windowed-irFFT+OLA+1/envelope, real part
    # wim_ref: (F*T, L_pad)     same, imaginary part
    # o_ref  : (tile_m, L_pad)  waveform output tile (single lane-dense store)

    # nearest resize (and HW -> (f,t) layout) as one one-hot matmul
    xr = jnp.dot(x_ref[...], r_ref[...], preferred_element_type=jnp.float32)
    mag = jnp.exp(xr) if log else xr                          # log-magnitude -> magnitude

    ph = ph_ref[...]
    re = mag * jnp.cos(ph)                                    # Re{mag * e^{i*phase}}
    im = mag * jnp.sin(ph)                                    # Im{mag * e^{i*phase}}

    # windowed inverse rFFT + overlap-add + trim + 1/envelope: two accumulating dots
    o_ref[...] = (jnp.dot(re, wre_ref[...], preferred_element_type=jnp.float32)
                  + jnp.dot(im, wim_ref[...], preferred_element_type=jnp.float32))


# ------------------------------------- wrapper -------------------------------------

def inverse_spectrogram_transform(x, phases, *, n_fft=16, hop_length=4,
                                  original_size=(9, 16), log=True,
                                  tile_m_max=None):
    """JAX/Pallas equivalent of InverseSpectogramTransform(predict_phases=False).forward."""
    B, C, Hs, Ws = x.shape
    if original_size == -1:
        n_freq, n_frames = Hs, Ws
    else:
        n_freq, n_frames = original_size
    FT = n_freq * n_frames
    L_out = hop_length * (n_frames - 1)
    L_pad = _round_up(max(L_out, 1), 128)                     # lane-dense output slab

    (R, Wre, Wim), L_out = _build_constants(n_fft, hop_length, n_freq, n_frames,
                                            Hs, Ws, L_pad)

    # ---- fold B*C into the matmul M dimension, pick an M tile ----
    M = B * C
    if tile_m_max is None:
        try:
            kind = jax.devices()[0].device_kind.lower()
        except Exception:
            kind = ""
        # v5e's MXU is 128-wide; v6e/v7x are 256-wide
        tile_m_max = 128 if ("v5 lite" in kind or "v5e" in kind) else 256
    # >= 2 grid steps so a v7x megacore can shard the "parallel" axis over both TCs
    tile_m = min(tile_m_max, max(8, _round_up((M + 1) // 2, 8)))
    m_pad = _round_up(max(M, 2 * tile_m), tile_m)
    grid_m = m_pad // tile_m

    # free row-major reshapes + cheap broadcast/pad (all plain XLA ops)
    x_flat = x.reshape(M, Hs * Ws).astype(jnp.float32)                       # (M, Hs*Ws)
    ph_flat = jnp.broadcast_to(phases.astype(jnp.float32),
                               (B, C, n_freq, n_frames)).reshape(M, FT)      # (M, F*T)
    if m_pad != M:
        x_flat = jnp.pad(x_flat, ((0, m_pad - M), (0, 0)))
        ph_flat = jnp.pad(ph_flat, ((0, m_pad - M), (0, 0)))

    kernel = functools.partial(_istft_kernel, log=log)

    def _run(const_pipeline_mode):
        def const_spec(shape):
            kwargs = {}
            if const_pipeline_mode is not None:
                kwargs["pipeline_mode"] = const_pipeline_mode
            return pl.BlockSpec(shape, lambda m: (0, 0), **kwargs)

        return pl.pallas_call(
            kernel,
            out_shape=jax.ShapeDtypeStruct((m_pad, L_pad), jnp.float32),
            grid_spec=pltpu.PrefetchScalarGridSpec(
                num_scalar_prefetch=0,
                grid=(grid_m,),
                in_specs=[
                    pl.BlockSpec((tile_m, Hs * Ws), lambda m: (m, 0)),   # x rows
                    pl.BlockSpec((tile_m, FT), lambda m: (m, 0)),        # phase rows
                    const_spec((Hs * Ws, FT)),                           # resize matrix
                    const_spec((FT, L_pad)),                             # istft real basis
                    const_spec((FT, L_pad)),                             # istft imag basis
                ],
                out_specs=pl.BlockSpec((tile_m, L_pad), lambda m: (m, 0)),
            ),
            compiler_params=pltpu.CompilerParams(
                dimension_semantics=("parallel",)),
        )(x_flat, ph_flat, R, Wre, Wim)

    out = None
    if hasattr(pl, "Buffered"):
        try:
            # grid-invariant constants: single buffer (halves their VMEM footprint)
            out = _run(pl.Buffered(1))
        except Exception:
            out = None
    if out is None:
        out = _run(None)   # fallback: default double-buffering

    # strip row/lane padding and restore (B, C, L_out)
    return out[:M, :L_out].reshape(B, C, L_out)


# ------------------------------- pure numpy reference -------------------------------

def _reference_numpy(x, phases, n_fft, hop, original_size, log=True):
    B, C, Hs, Ws = x.shape
    F, T = original_size
    idx_h = np.clip(np.floor(np.arange(F) * Hs / F).astype(int), 0, Hs - 1)
    idx_w = np.clip(np.floor(np.arange(T) * Ws / T).astype(int), 0, Ws - 1)
    xr = x[:, :, idx_h][:, :, :, idx_w]                               # (B, C, F, T)
    mag = np.exp(xr) if log else xr
    spec = mag * np.exp(1j * phases)                                  # broadcast over C
    N = n_fft
    win = 0.5 * (1.0 - np.cos(2.0 * np.pi * np.arange(N) / N))
    dc = np.real(spec[..., 0:1, :]).astype(np.complex128)
    ny = np.real(spec[..., N // 2:N // 2 + 1, :]).astype(np.complex128)
    mid = spec[..., 1:N // 2, :].astype(np.complex128)
    full = np.concatenate([dc, mid, ny, np.conj(mid[..., ::-1, :])], axis=-2)
    frames = np.real(np.fft.ifft(full, axis=-2)) * win[:, None]       # (B, C, N, T)
    L_full = N + hop * (T - 1)
    y = np.zeros((B, C, L_full))
    env = np.zeros((L_full,))
    for t in range(T):
        y[..., t * hop:t * hop + N] += frames[..., :, t]
        env[t * hop:t * hop + N] += win ** 2
    pad = N // 2
    L_out = hop * (T - 1)
    return y[..., pad:pad + L_out] / env[pad:pad + L_out]


if __name__ == "__main__":
    B, C, RS = 2, 2, 8                      # batch, channels, reshape_size
    n_fft, hop = 16, 4
    n_freq, n_frames = n_fft // 2 + 1, 16   # original_size = (freq bins, time frames)

    key = jax.random.PRNGKey(0)
    k1, k2 = jax.random.split(key)
    x = 0.1 * jax.random.normal(k1, (B, C, RS, RS), jnp.float32)
    phases = jnp.pi * jax.random.normal(k2, (B, 1, n_freq, n_frames), jnp.float32)

    out = inverse_spectrogram_transform(
        x, phases, n_fft=n_fft, hop_length=hop,
        original_size=(n_freq, n_frames), log=True)
    out = jax.block_until_ready(out)

    L_out = hop * (n_frames - 1)
    assert out.shape == (B, C, L_out), out.shape
    out_np = np.asarray(out)
    assert np.isfinite(out_np).all()        # mirrors the torch.isfinite assert (host-side)
    ref = _reference_numpy(np.asarray(x), np.asarray(phases),
                           n_fft, hop, (n_freq, n_frames), log=True)
    err = float(np.max(np.abs(out_np - ref)))
    # f32 path typically lands ~1e-5; keep a conservative bound for MXU precision modes
    assert err < 5e-2, f"max abs err {err}"
    print("KERNEL_OK")
</pallas_src>

<mosaic_0001>
module attributes {stable_mosaic.version = 11 : i64} {
  func.func @_istft_kernel(%arg0: i32, %arg1: memref<8x64xf32, #tpu.memory_space<vmem>>, %arg2: memref<8x144xf32, #tpu.memory_space<vmem>>, %arg3: memref<64x144xf32, #tpu.memory_space<vmem>>, %arg4: memref<144x128xf32, #tpu.memory_space<vmem>>, %arg5: memref<144x128xf32, #tpu.memory_space<vmem>>, %arg6: memref<8x128xf32, #tpu.memory_space<vmem>>) attributes {dimension_semantics = [#tpu.dimension_semantics<parallel>], iteration_bounds = array<i64: 2>, scalar_prefetch = 0 : i64, scratch_operands = 0 : i64, tpu.core_type = #tpu.core_type<tc>, window_params = [{transform_indices = @transform_0, window_bounds = array<i64: 8, 64>}, {transform_indices = @transform_1, window_bounds = array<i64: 8, 144>}, {pipeline_mode = #tpu.pipeline_mode<synchronous>, transform_indices = @transform_2, window_bounds = array<i64: 64, 144>}, {pipeline_mode = #tpu.pipeline_mode<synchronous>, transform_indices = @transform_3, window_bounds = array<i64: 144, 128>}, {pipeline_mode = #tpu.pipeline_mode<synchronous>, transform_indices = @transform_4, window_bounds = array<i64: 144, 128>}, {transform_indices = @transform_5, window_bounds = array<i64: 8, 128>}]} {
    %c0 = arith.constant 0 : index
    %c0_0 = arith.constant 0 : index
    %0 = vector.load %arg1[%c0, %c0_0] : memref<8x64xf32, #tpu.memory_space<vmem>>, vector<8x64xf32>
    %c0_1 = arith.constant 0 : index
    %c0_2 = arith.constant 0 : index
    %1 = vector.load %arg3[%c0_1, %c0_2] : memref<64x144xf32, #tpu.memory_space<vmem>>, vector<64x144xf32>
    %cst = arith.constant dense<0.000000e+00> : vector<8x144xf32>
    %2 = tpu.matmul %0, %1, %cst {dimension_numbers = #tpu.dot_dimension_numbers<[1], [0], [0], [1], [0, 0, 1, 1], [], []>} : vector<8x64xf32>, vector<64x144xf32>, vector<8x144xf32> -> vector<8x144xf32>
    %3 = math.exp %2 : vector<8x144xf32>
    %c0_3 = arith.constant 0 : index
    %c0_4 = arith.constant 0 : index
    %4 = vector.load %arg2[%c0_3, %c0_4] : memref<8x144xf32, #tpu.memory_space<vmem>>, vector<8x144xf32>
    %5 = math.cos %4 : vector<8x144xf32>
    %6 = arith.mulf %3, %5 : vector<8x144xf32>
    %7 = math.sin %4 : vector<8x144xf32>
    %8 = arith.mulf %3, %7 : vector<8x144xf32>
    %c0_5 = arith.constant 0 : index
    %c0_6 = arith.constant 0 : index
    %9 = vector.load %arg4[%c0_5, %c0_6] : memref<144x128xf32, #tpu.memory_space<vmem>>, vector<144x128xf32>
    %cst_7 = arith.constant dense<0.000000e+00> : vector<8x128xf32>
    %10 = tpu.matmul %6, %9, %cst_7 {dimension_numbers = #tpu.dot_dimension_numbers<[1], [0], [0], [1], [0, 0, 1, 1], [], []>} : vector<8x144xf32>, vector<144x128xf32>, vector<8x128xf32> -> vector<8x128xf32>
    %c0_8 = arith.constant 0 : index
    %c0_9 = arith.constant 0 : index
    %11 = vector.load %arg5[%c0_8, %c0_9] : memref<144x128xf32, #tpu.memory_space<vmem>>, vector<144x128xf32>
    %cst_10 = arith.constant dense<0.000000e+00> : vector<8x128xf32>
    %12 = tpu.matmul %8, %11, %cst_10 {dimension_numbers = #tpu.dot_dimension_numbers<[1], [0], [0], [1], [0, 0, 1, 1], [], []>} : vector<8x144xf32>, vector<144x128xf32>, vector<8x128xf32> -> vector<8x128xf32>
    %13 = arith.addf %10, %12 : vector<8x128xf32>
    %c0_11 = arith.constant 0 : index
    %c0_12 = arith.constant 0 : index
    %14 = vector.load %arg6[%c0_11, %c0_12] : memref<8x128xf32, #tpu.memory_space<vmem>>, vector<8x128xf32>
    tpu.vector_store %arg6[%c0_11, %c0_12], %13 {strides = array<i32>} : memref<8x128xf32, #tpu.memory_space<vmem>>, vector<8x128xf32>,
    return
  }
  func.func @transform_0(%arg0: i32) -> (i32, i32) {
    %c0_i32 = arith.constant 0 : i32
    %c0_i32_0 = arith.constant 0 : i32
    return %arg0, %c0_i32 : i32, i32
  }
  func.func @transform_1(%arg0: i32) -> (i32, i32) {
    %c0_i32 = arith.constant 0 : i32
    %c0_i32_0 = arith.constant 0 : i32
    return %arg0, %c0_i32 : i32, i32
  }
  func.func @transform_2(%arg0: i32) -> (i32, i32) {
    %c0_i32 = arith.constant 0 : i32
    %c0_i32_0 = arith.constant 0 : i32
    %c0_i32_1 = arith.constant 0 : i32
    return %c0_i32, %c0_i32_0 : i32, i32
  }
  func.func @transform_3(%arg0: i32) -> (i32, i32) {
    %c0_i32 = arith.constant 0 : i32
    %c0_i32_0 = arith.constant 0 : i32
    %c0_i32_1 = arith.constant 0 : i32
    return %c0_i32, %c0_i32_0 : i32, i32
  }
  func.func @transform_4(%arg0: i32) -> (i32, i32) {
    %c0_i32 = arith.constant 0 : i32
    %c0_i32_0 = arith.constant 0 : i32
    %c0_i32_1 = arith.constant 0 : i32
    return %c0_i32, %c0_i32_0 : i32, i32
  }
  func.func @transform_5(%arg0: i32) -> (i32, i32) {
    %c0_i32 = arith.constant 0 : i32
    %c0_i32_0 = arith.constant 0 : i32
    return %arg0, %c0_i32 : i32, i32
  }
}

module attributes {stable_mosaic.version = 11 : i64} {
  func.func @_istft_kernel(%arg0: i32, %arg1: memref<8x64xf32, #tpu.memory_space<vmem>>, %arg2: memref<8x144xf32, #tpu.memory_space<vmem>>, %arg3: memref<64x144xf32, #tpu.memory_space<vmem>>, %arg4: memref<144x128xf32, #tpu.memory_space<vmem>>, %arg5: memref<144x128xf32, #tpu.memory_space<vmem>>, %arg6: memref<8x128xf32, #tpu.memory_space<vmem>>) attributes {dimension_semantics = [#tpu.dimension_semantics<parallel>], iteration_bounds = array<i64: 2>, scalar_prefetch = 0 : i64, scratch_operands = 0 : i64, tpu.core_type = #tpu.core_type<tc>, window_params = [{transform_indices = @transform_0, window_bounds = array<i64: 8, 64>}, {transform_indices = @transform_1, window_bounds = array<i64: 8, 144>}, {pipeline_mode = #tpu.pipeline_mode<synchronous>, transform_indices = @transform_2, window_bounds = array<i64: 64, 144>}, {pipeline_mode = #tpu.pipeline_mode<synchronous>, transform_indices = @transform_3, window_bounds = array<i64: 144, 128>}, {pipeline_mode = #tpu.pipeline_mode<synchronous>, transform_indices = @transform_4, window_bounds = array<i64: 144, 128>}, {transform_indices = @transform_5, window_bounds = array<i64: 8, 128>}]} {
    %c0 = arith.constant 0 : index
    %c0_0 = arith.constant 0 : index
    %0 = vector.load %arg1[%c0, %c0_0] : memref<8x64xf32, #tpu.memory_space<vmem>>, vector<8x64xf32>
    %c0_1 = arith.constant 0 : index
    %c0_2 = arith.constant 0 : index
    %1 = vector.load %arg3[%c0_1, %c0_2] : memref<64x144xf32, #tpu.memory_space<vmem>>, vector<64x144xf32>
    %cst = arith.constant dense<0.000000e+00> : vector<8x144xf32>
    %2 = tpu.matmul %0, %1, %cst {dimension_numbers = #tpu.dot_dimension_numbers<[1], [0], [0], [1], [0, 0, 1, 1], [], []>} : vector<8x64xf32>, vector<64x144xf32>, vector<8x144xf32> -> vector<8x144xf32>
    %3 = math.exp %2 : vector<8x144xf32>
    %c0_3 = arith.constant 0 : index
    %c0_4 = arith.constant 0 : index
    %4 = vector.load %arg2[%c0_3, %c0_4] : memref<8x144xf32, #tpu.memory_space<vmem>>, vector<8x144xf32>
    %5 = math.cos %4 : vector<8x144xf32>
    %6 = arith.mulf %3, %5 : vector<8x144xf32>
    %7 = math.sin %4 : vector<8x144xf32>
    %8 = arith.mulf %3, %7 : vector<8x144xf32>
    %c0_5 = arith.constant 0 : index
    %c0_6 = arith.constant 0 : index
    %9 = vector.load %arg4[%c0_5, %c0_6] : memref<144x128xf32, #tpu.memory_space<vmem>>, vector<144x128xf32>
    %cst_7 = arith.constant dense<0.000000e+00> : vector<8x128xf32>
    %10 = tpu.matmul %6, %9, %cst_7 {dimension_numbers = #tpu.dot_dimension_numbers<[1], [0], [0], [1], [0, 0, 1, 1], [], []>} : vector<8x144xf32>, vector<144x128xf32>, vector<8x128xf32> -> vector<8x128xf32>
    %c0_8 = arith.constant 0 : index
    %c0_9 = arith.constant 0 : index
    %11 = vector.load %arg5[%c0_8, %c0_9] : memref<144x128xf32, #tpu.memory_space<vmem>>, vector<144x128xf32>
    %cst_10 = arith.constant dense<0.000000e+00> : vector<8x128xf32>
    %12 = tpu.matmul %8, %11, %cst_10 {dimension_numbers = #tpu.dot_dimension_numbers<[1], [0], [0], [1], [0, 0, 1, 1], [], []>} : vector<8x144xf32>, vector<144x128xf32>, vector<8x128xf32> -> vector<8x128xf32>
    %13 = arith.addf %10, %12 : vector<8x128xf32>
    %c0_11 = arith.constant 0 : index
    %c0_12 = arith.constant 0 : index
    %14 = vector.load %arg6[%c0_11, %c0_12] : memref<8x128xf32, #tpu.memory_space<vmem>>, vector<8x128xf32>
    tpu.vector_store %arg6[%c0_11, %c0_12], %13 {strides = array<i32>} : memref<8x128xf32, #tpu.memory_space<vmem>>, vector<8x128xf32>,
    return
  }
  func.func @transform_0(%arg0: i32) -> (i32, i32) {
    %c0_i32 = arith.constant 0 : i32
    %c0_i32_0 = arith.constant 0 : i32
    return %arg0, %c0_i32 : i32, i32
  }
  func.func @transform_1(%arg0: i32) -> (i32, i32) {
    %c0_i32 = arith.constant 0 : i32
    %c0_i32_0 = arith.constant 0 : i32
    return %arg0, %c0_i32 : i32, i32
  }
  func.func @transform_2(%arg0: i32) -> (i32, i32) {
    %c0_i32 = arith.constant 0 : i32
    %c0_i32_0 = arith.constant 0 : i32
    %c0_i32_1 = arith.constant 0 : i32
    return %c0_i32, %c0_i32_0 : i32, i32
  }
  func.func @transform_3(%arg0: i32) -> (i32, i32) {
    %c0_i32 = arith.constant 0 : i32
    %c0_i32_0 = arith.constant 0 : i32
    %c0_i32_1 = arith.constant 0 : i32
    return %c0_i32, %c0_i32_0 : i32, i32
  }
  func.func @transform_4(%arg0: i32) -> (i32, i32) {
    %c0_i32 = arith.constant 0 : i32
    %c0_i32_0 = arith.constant 0 : i32
    %c0_i32_1 = arith.constant 0 : i32
    return %c0_i32, %c0_i32_0 : i32, i32
  }
  func.func @transform_5(%arg0: i32) -> (i32, i32) {
    %c0_i32 = arith.constant 0 : i32
    %c0_i32_0 = arith.constant 0 : i32
    return %arg0, %c0_i32 : i32, i32
  }
}

</mosaic_0001>

<llo_original>
// kernel: tpu_custom_call.1
$region0: #{tpu_custom_call.1}
  #allocation0 [shape = 'u32[]', space=smem, size = 0x4, offset = 0x4, fixed_abs, tag = 'smem constant byte address 0x4 - core index']
  #allocation1 [shape = 'u32[144,128]{1,0:T(1,128)}', space=vmem, size = 0x12000, scoped, tag = 'internal scratch']
  %s0 = inlined_call_operand.hbm [shape: f32[16,64], index: 0, kind: input, shape index: {}]
  %s1 = inlined_call_operand.hbm [shape: f32[16,144], index: 1, kind: input, shape index: {}]
  %s2 = inlined_call_operand.hbm [shape: f32[64,144], index: 2, kind: input, shape index: {}]
  %s3 = inlined_call_operand.hbm [shape: f32[144,128], index: 3, kind: input, shape index: {}]
  %s4 = inlined_call_operand.hbm [shape: f32[144,128], index: 4, kind: input, shape index: {}]
  %s5 = inlined_call_operand.hbm [shape: f32[16,128], index: 5, kind: output, shape index: {}]
  %s6 = sld [smem:[#allocation0]]
  $region73: #{tpu_custom_call.1} parent=0
    _
  %s8 = ssub.s32 1, %s6
  %s9 = scalar_select 0, %s8, %s6
  $region1: #{tpu_custom_call.1} parent=0
    #allocation2 [shape = 'u8[8192]{0}', space=vmem, size = 0x2000, scoped, tag = 'input window, operand 0']
    #allocation3 [shape = 's32[2]{0}', space=sflag, size = 0x8, scoped, tag = 'scoped memory for tpu_custom_call.1']
    #allocation4 [shape = 's32[2]{0}', space=sflag, size = 0x8, scoped, tag = 'scoped memory for tpu_custom_call.1']
    #allocation5 [shape = 'u8[16384]{0}', space=vmem, size = 0x4000, scoped, tag = 'input window, operand 1']
    #allocation6 [shape = 's32[2]{0}', space=sflag, size = 0x8, scoped, tag = 'scoped memory for tpu_custom_call.1']
    #allocation7 [shape = 'u8[65536]{0}', space=vmem, size = 0x10000, scoped, tag = 'input window, operand 2, single buffered']
    #allocation8 [shape = 'u8[73728]{0}', space=vmem, size = 0x12000, scoped, tag = 'input window, operand 3, single buffered']
    #allocation9 [shape = 's32[1]{0}', space=sflag, size = 0x4, scoped, tag = 'scoped memory for tpu_custom_call.1']
    #allocation10 [shape = 'u8[73728]{0}', space=vmem, size = 0x12000, scoped, tag = 'input window, operand 4, single buffered']
    #allocation11 [shape = 'u8[8192]{0}', space=vmem, size = 0x2000, scoped, tag = 'output window, operand 0']
    %10 = vsyncpa [#allocation3], 0
    %s11 = scalar_lea.sflag [#allocation3], 1
    %12 = vsyncpa %s11, 0
    %13 = vsyncpa [#allocation6], 0
    %s14 = scalar_lea.sflag [#allocation6], 1
    %15 = vsyncpa %s14, 0
    %16 = vsyncpa [#allocation9], 0
    %17 = vsyncpa [#allocation4], 0
    %s18 = scalar_lea.sflag [#allocation4], 1
    %19 = vsyncpa %s18, 0
    loop: start=0, step=1, limit=4
    $region2: #{tpu_custom_call.1} parent=1 // loop_pre_header
      _
    $region3: #{tpu_custom_call.1} parent=1 // loop_header
      %s21 = sphi 0, %s25
      %p22 = scmp.ge.s32.totalorder %s21, 4
      %s31 = sphi 0, %s33
      %s34 = sphi 0, %s31
      %s35 = sphi 0, %s34
      %s51 = sphi 0, %s35
      %s57 = sphi 0, %s59
      %s60 = sphi 0, %s57
      %s61 = sphi 0, %s60
      %s77 = sphi 0, %s61
      %s81 = sphi 0, %s81
      %s83 = sphi 0, %s81
      %s84 = sphi 0, %s83
      %s98 = sphi 0, %s84
      %s102 = sphi 0, %s102
      %s104 = sphi 0, %s102
      %s105 = sphi 0, %s104
      %s119 = sphi 0, %s105
      %s123 = sphi 0, %s123
      %s125 = sphi 0, %s123
      %s126 = sphi 0, %s125
      %s140 = sphi 0, %s126
      %s146 = sphi 0, %s148
      %s149 = sphi 0, %s146
      %s150 = sphi 0, %s149
      %s166 = sphi 0, %s150
    $region4: #{tpu_custom_call.1} parent=1 // loop_header_branch
      %24 = sbr.rel (%p22) target = $region8
    $region5: #{tpu_custom_call.1} parent=1 // loop_body
      %s26 = ssub.s32 %s21, 1
      %s27 = ssub.s32 %s21, 2
      %s28 = sadd.s32 %s21, 1
      %s29 = ssub.s32 %s21, %s28
      %p30 = scmp.eq.s32.totalorder %s29, 0
      %s32 = sadd.s32 %s31, 1
      %s33 = scalar_select %p30, %s31, %s32
      %p36 = pneg %p30
      %p37 = scmp.eq.s32.totalorder %s21, 1
      %p38 = por %p36, %p37
      %p39 = scmp.ne.s32.totalorder %s31, %s34
      %p40 = scmp.eq.s32.totalorder %s21, 0
      %p41 = por %p39, %p40
      %p42 = scmp.ne.s32.totalorder %s31, %s34
      %p43 = scmp.eq.s32.totalorder %s26, 1
      %p44 = por %p42, %p43
      %p45 = scmp.ne.s32.totalorder %s34, %s35
      %p46 = scmp.eq.s32.totalorder %s26, 0
      %p47 = por %p45, %p46
      %p48 = scmp.ne.s32.totalorder %s34, %s35
      %p49 = scmp.eq.s32.totalorder %s27, 1
      %p50 = por %p48, %p49
      %p52 = scmp.ne.s32.totalorder %s35, %s51
      %p53 = scmp.eq.s32.totalorder %s27, 0
      %p54 = por %p52, %p53
      %s55 = ssub.s32 %s21, %s28
      %p56 = scmp.eq.s32.totalorder %s55, 0
      %s58 = sadd.s32 %s57, 1
      %s59 = scalar_select %p56, %s57, %s58
      %p62 = pneg %p56
      %p63 = scmp.eq.s32.totalorder %s21, 1
      %p64 = por %p62, %p63
      %p65 = scmp.ne.s32.totalorder %s57, %s60
      %p66 = scmp.eq.s32.totalorder %s21, 0
      %p67 = por %p65, %p66
      %p68 = scmp.ne.s32.totalorder %s57, %s60
      %p69 = scmp.eq.s32.totalorder %s26, 1
      %p70 = por %p68, %p69
      %p71 = scmp.ne.s32.totalorder %s60, %s61
      %p72 = scmp.eq.s32.totalorder %s26, 0
      %p73 = por %p71, %p72
      %p74 = scmp.ne.s32.totalorder %s60, %s61
      %p75 = scmp.eq.s32.totalorder %s27, 1
      %p76 = por %p74, %p75
      %p78 = scmp.ne.s32.totalorder %s61, %s77
      %p79 = scmp.eq.s32.totalorder %s27, 0
      %p80 = por %p78, %p79
      %s82 = sadd.s32 %s81, 1
      %p85 = scmp.eq.s32.totalorder %s21, 1
      %p86 = scmp.ne.s32.totalorder %s81, %s83
      %p87 = scmp.eq.s32.totalorder %s21, 0
      %p88 = por %p86, %p87
      %p89 = scmp.ne.s32.totalorder %s81, %s83
      %p90 = scmp.eq.s32.totalorder %s26, 1
      %p91 = por %p89, %p90
      %p92 = scmp.ne.s32.totalorder %s83, %s84
      %p93 = scmp.eq.s32.totalorder %s26, 0
      %p94 = por %p92, %p93
      %p95 = scmp.ne.s32.totalorder %s83, %s84
      %p96 = scmp.eq.s32.totalorder %s27, 1
      %p97 = por %p95, %p96
      %p99 = scmp.ne.s32.totalorder %s84, %s98
      %p100 = scmp.eq.s32.totalorder %s27, 0
      %p101 = por %p99, %p100
      %s103 = sadd.s32 %s102, 1
      %p106 = scmp.eq.s32.totalorder %s21, 1
      %p107 = scmp.ne.s32.totalorder %s102, %s104
      %p108 = scmp.eq.s32.totalorder %s21, 0
      %p109 = por %p107, %p108
      %p110 = scmp.ne.s32.totalorder %s102, %s104
      %p111 = scmp.eq.s32.totalorder %s26, 1
      %p112 = por %p110, %p111
      %p113 = scmp.ne.s32.totalorder %s104, %s105
      %p114 = scmp.eq.s32.totalorder %s26, 0
      %p115 = por %p113, %p114
      %p116 = scmp.ne.s32.totalorder %s104, %s105
      %p117 = scmp.eq.s32.totalorder %s27, 1
      %p118 = por %p116, %p117
      %p120 = scmp.ne.s32.totalorder %s105, %s119
      %p121 = scmp.eq.s32.totalorder %s27, 0
      %p122 = por %p120, %p121
      %s124 = sadd.s32 %s123, 1
      %p127 = scmp.eq.s32.totalorder %s21, 1
      %p128 = scmp.ne.s32.totalorder %s123, %s125
      %p129 = scmp.eq.s32.totalorder %s21, 0
      %p130 = por %p128, %p129
      %p131 = scmp.ne.s32.totalorder %s123, %s125
      %p132 = scmp.eq.s32.totalorder %s26, 1
      %p133 = por %p131, %p132
      %p134 = scmp.ne.s32.totalorder %s125, %s126
      %p135 = scmp.eq.s32.totalorder %s26, 0
      %p136 = por %p134, %p135
      %p137 = scmp.ne.s32.totalorder %s125, %s126
      %p138 = scmp.eq.s32.totalorder %s27, 1
      %p139 = por %p137, %p138
      %p141 = scmp.ne.s32.totalorder %s126, %s140
      %p142 = scmp.eq.s32.totalorder %s27, 0
      %p143 = por %p141, %p142
      %s144 = ssub.s32 %s21, %s28
      %p145 = scmp.eq.s32.totalorder %s144, 0
      %s147 = sadd.s32 %s146, 1
      %s148 = scalar_select %p145, %s146, %s147
      %p151 = pneg %p145
      %p152 = scmp.eq.s32.totalorder %s21, 1
      %p153 = por %p151, %p152
      %p154 = scmp.ne.s32.totalorder %s146, %s149
      %p155 = scmp.eq.s32.totalorder %s21, 0
      %p156 = por %p154, %p155
      %p157 = scmp.ne.s32.totalorder %s146, %s149
      %p158 = scmp.eq.s32.totalorder %s26, 1
      %p159 = por %p157, %p158
      %p160 = scmp.ne.s32.totalorder %s149, %s150
      %p161 = scmp.eq.s32.totalorder %s26, 0
      %p162 = por %p160, %p161
      %p163 = scmp.ne.s32.totalorder %s149, %s150
      %p164 = scmp.eq.s32.totalorder %s27, 1
      %p165 = por %p163, %p164
      %p167 = scmp.ne.s32.totalorder %s150, %s166
      %p168 = scmp.eq.s32.totalorder %s27, 0
      %p169 = por %p167, %p168
      %p170 = scmp.le.s32.totalorder 1, %s21
      %p171 = scmp.lt.s32.totalorder %s21, 3
      %p172 = pnand %p170, %p171
      %p173 = pneg %p172
      // Predicated region
      $region9: #{tpu_custom_call.1} parent=5 // pred_check
        _
      $region10: #{tpu_custom_call.1} parent=5 // pred_check_branch
        %175 = sbr.rel (%p172) target = $region12
      $region11: #{tpu_custom_call.1} parent=5 // pred_region
        %s176 = ssub.s32 %s21, 1
        // Predicated region
        $region13: #{tpu_custom_call.1} parent=11 // pred_check
          %p177 = pneg %p94
        $region14: #{tpu_custom_call.1} parent=11 // pred_check_branch
          %179 = sbr.rel (%p177) target = $region16
        $region15: #{tpu_custom_call.1} parent=11 // pred_region
          %s181 = ssub.s32 2048, 2048
          %182 = vsyncadd [#allocation6], %s181
          %s183 = sshll.u32 [#allocation7], 4
          %s184 = int_to_ptr.vmem [resolvable:$true] %s183
          %189 = dma.hbm_to_vmem [thread:$0]  %s2, 2048, %s184, [#allocation6], 256, 256, 16
        $region16: #{tpu_custom_call.1} parent=11 // pred_fallthru
          _
        // Predicated region
        $region17: #{tpu_custom_call.1} parent=11 // pred_check
          %p190 = pneg %p115
        $region18: #{tpu_custom_call.1} parent=11 // pred_check_branch
          %192 = sbr.rel (%p190) target = $region20
        $region19: #{tpu_custom_call.1} parent=11 // pred_region
          %s194 = ssub.s32 2304, 2304
          %195 = vsyncadd [#allocation9], %s194
          %s196 = sshll.u32 [#allocation8], 4
          %s197 = int_to_ptr.vmem [resolvable:$true] %s196
          %202 = dma.hbm_to_vmem [thread:$0]  %s3, 2304, %s197, [#allocation9], 128, 128, 8
        $region20: #{tpu_custom_call.1} parent=11 // pred_fallthru
          _
        // Predicated region
        $region21: #{tpu_custom_call.1} parent=11 // pred_check
          %p203 = pneg %p136
        $region22: #{tpu_custom_call.1} parent=11 // pred_check_branch
          %205 = sbr.rel (%p203) target = $region24
        $region23: #{tpu_custom_call.1} parent=11 // pred_region
          %s207 = ssub.s32 2304, 2304
          %208 = vsyncadd [#allocation9], %s207
          %s209 = sshll.u32 [#allocation10], 4
          %s210 = int_to_ptr.vmem [resolvable:$true] %s209
          %215 = dma.hbm_to_vmem [thread:$0]  %s4, 2304, %s210, [#allocation9], 128, 128, 8
        $region24: #{tpu_custom_call.1} parent=11 // pred_fallthru
          _
      $region12: #{tpu_custom_call.1} parent=5 // pred_fallthru
        _
      %p216 = scmp.lt.s32.totalorder %s21, 2
      // Predicated region
      $region25: #{tpu_custom_call.1} parent=5 // pred_check
        %p217 = pneg %p216
      $region26: #{tpu_custom_call.1} parent=5 // pred_check_branch
        %219 = sbr.rel (%p217) target = $region28
      $region27: #{tpu_custom_call.1} parent=5 // pred_region
        // Predicated region
        $region29: #{tpu_custom_call.1} parent=27 // pred_check
          %p220 = pneg %p41
        $region30: #{tpu_custom_call.1} parent=27 // pred_check_branch
          %222 = sbr.rel (%p220) target = $region32
        $region31: #{tpu_custom_call.1} parent=27 // pred_region
          %s223 = sand.u32 %s31, 1
          %s224 = scalar_lea.sflag [#allocation3], %s223
          %s225 = sand.u32 %s31, 1
          %s226 = smul.addr %s225, 8
          %s227 = scalar_lea.vmem [#allocation2], %s226
          %s229 = ssub.s32 128, 128
          %230 = vsyncadd %s224, %s229
          %s231 = smul.addr %s21, 128
          %s232 = scalar_lea.hbm %s0, %s231
          %s234 = sshll.u32 %s227, 4
          %s235 = int_to_ptr.vmem [resolvable:$true] %s234
          %237 = dma.hbm_to_vmem [thread:$0]  %s232, 128, %s235, %s224
        $region32: #{tpu_custom_call.1} parent=27 // pred_fallthru
          _
        // Predicated region
        $region33: #{tpu_custom_call.1} parent=27 // pred_check
          %p238 = pneg %p67
        $region34: #{tpu_custom_call.1} parent=27 // pred_check_branch
          %240 = sbr.rel (%p238) target = $region36
        $region35: #{tpu_custom_call.1} parent=27 // pred_region
          %s241 = sand.u32 %s21, 1
          %s242 = scalar_lea.sflag [#allocation6], %s241
          %s243 = sand.u32 %s57, 1
          %s244 = smul.addr %s243, 16
          %s245 = scalar_lea.vmem [#allocation5], %s244
          %s247 = ssub.s32 256, 256
          %248 = vsyncadd %s242, %s247
          %s249 = smul.addr %s21, 2
          %s250 = smul.addr %s249, 128
          %s251 = scalar_lea.hbm %s1, %s250
          %s253 = sshll.u32 %s245, 4
          %s254 = int_to_ptr.vmem [resolvable:$true] %s253
          %256 = dma.hbm_to_vmem [thread:$0]  %s251, 256, %s254, %s242
        $region36: #{tpu_custom_call.1} parent=27 // pred_fallthru
          _
      $region28: #{tpu_custom_call.1} parent=5 // pred_fallthru
        _
      %p257 = scmp.le.s32.totalorder 1, %s21
      %p258 = scmp.lt.s32.totalorder %s21, 3
      %p259 = pnand %p257, %p258
      %p260 = pneg %p259
      // Predicated region
      $region37: #{tpu_custom_call.1} parent=5 // pred_check
        _
      $region38: #{tpu_custom_call.1} parent=5 // pred_check_branch
        %262 = sbr.rel (%p259) target = $region40
      $region39: #{tpu_custom_call.1} parent=5 // pred_region
        %s263 = ssub.s32 %s21, 1
        %s264 = sand.u32 %s34, 1
        %s265 = scalar_lea.sflag [#allocation3], %s264
        %s266 = sand.u32 %s34, 1
        %s267 = smul.addr %s266, 8
        %s268 = scalar_lea.vmem [#allocation2], %s267
        // Predicated region
        $region41: #{tpu_custom_call.1} parent=39 // pred_check
          %p269 = pneg %p47
        $region42: #{tpu_custom_call.1} parent=39 // pred_check_branch
          %271 = sbr.rel (%p269) target = $region44
        $region43: #{tpu_custom_call.1} parent=39 // pred_region
          %272 = dma.done %s265, 128
        $region44: #{tpu_custom_call.1} parent=39 // pred_fallthru
          _
        %s273 = sand.u32 %s26, 1
        %s274 = scalar_lea.sflag [#allocation6], %s273
        %s275 = sand.u32 %s60, 1
        %s276 = smul.addr %s275, 16
        %s277 = scalar_lea.vmem [#allocation5], %s276
        // Predicated region
        $region45: #{tpu_custom_call.1} parent=39 // pred_check
          %p278 = pneg %p73
        $region46: #{tpu_custom_call.1} parent=39 // pred_check_branch
          %280 = sbr.rel (%p278) target = $region48
        $region47: #{tpu_custom_call.1} parent=39 // pred_region
          %281 = dma.done %s274, 256
        $region48: #{tpu_custom_call.1} parent=39 // pred_fallthru
          _
        // Predicated region
        $region49: #{tpu_custom_call.1} parent=39 // pred_check
          %p282 = pneg %p94
        $region50: #{tpu_custom_call.1} parent=39 // pred_check_branch
          %284 = sbr.rel (%p282) target = $region52
        $region51: #{tpu_custom_call.1} parent=39 // pred_region
          %285 = dma.done [#allocation6], 2048
        $region52: #{tpu_custom_call.1} parent=39 // pred_fallthru
          _
        // Predicated region
        $region53: #{tpu_custom_call.1} parent=39 // pred_check
          %p286 = pneg %p115
        $region54: #{tpu_custom_call.1} parent=39 // pred_check_branch
          %288 = sbr.rel (%p286) target = $region56
        $region55: #{tpu_custom_call.1} parent=39 // pred_region
          %289 = dma.done [#allocation9], 2304
        $region56: #{tpu_custom_call.1} parent=39 // pred_fallthru
          _
        // Predicated region
        $region57: #{tpu_custom_call.1} parent=39 // pred_check
          %p290 = pneg %p136
        $region58: #{tpu_custom_call.1} parent=39 // pred_check_branch
          %292 = sbr.rel (%p290) target = $region60
        $region59: #{tpu_custom_call.1} parent=39 // pred_region
          %293 = dma.done [#allocation9], 2304
        $region60: #{tpu_custom_call.1} parent=39 // pred_fallthru
          _
        %s294 = sand.u32 %s34, 1
        %s295 = scalar_lea.sflag [#allocation3], %s294
        %s296 = sand.u32 %s34, 1
        %s297 = smul.addr %s296, 8
        %s298 = scalar_lea.vmem [#allocation2], %s297
        %p299 = pneg %p47
        %p300 = pneg %p44
        %s301 = sand.u32 %s26, 1
        %s302 = scalar_lea.sflag [#allocation6], %s301
        %s303 = sand.u32 %s60, 1
        %s304 = smul.addr %s303, 16
        %s305 = scalar_lea.vmem [#allocation5], %s304
        %p306 = pneg %p73
        %p307 = pneg %p70
        %p308 = pneg %p94
        %p309 = pneg %p91
        %p310 = pneg %p115
        %p311 = pneg %p112
        %p312 = pneg %p136
        %p313 = pneg %p133
        %p314 = pneg %p162
        %p315 = pneg %p159
        %s316 = sand.u32 %s149, 1
        %s317 = scalar_lea.sflag [#allocation4], %s316
        %s318 = sand.u32 %s149, 1
        %s319 = smul.addr %s318, 8
        %s320 = scalar_lea.vmem [#allocation11], %s319
        %v321 = vld [vmem:[%s268] sm:$0xff]
        %v322 = vld [vmem:[#allocation7] sm:$0xff]
        %v323 = vld [vmem:[#allocation7 + $0x8] sm:$0xff]
        %v324 = vld [vmem:[#allocation7 + $0x10] sm:$0xff]
        %v325 = vld [vmem:[#allocation7 + $0x18] sm:$0xff]
        %v326 = vld [vmem:[#allocation7 + $0x20] sm:$0xff]
        %v327 = vld [vmem:[#allocation7 + $0x28] sm:$0xff]
        %v328 = vld [vmem:[#allocation7 + $0x30] sm:$0xff]
        %v329 = vld [vmem:[#allocation7 + $0x38] sm:$0xff]
        %v330 = vld [vmem:[#allocation7 + $0x40] sm:$0xff]
        %v331 = vld [vmem:[#allocation7 + $0x48] sm:$0xff]
        %v332 = vld [vmem:[#allocation7 + $0x50] sm:$0xff]
        %v333 = vld [vmem:[#allocation7 + $0x58] sm:$0xff]
        %v334 = vld [vmem:[#allocation7 + $0x60] sm:$0xff]
        %v335 = vld [vmem:[#allocation7 + $0x68] sm:$0xff]
        %v336 = vld [vmem:[#allocation7 + $0x70] sm:$0xff]
        %v337 = vld [vmem:[#allocation7 + $0x78] sm:$0xff]
        %vm338 = vcmask 523264
        %v340 = vsel %vm338, %v321, 0
        %342 = vmatprep.subr.mxu0 %v323
        %343 = vmatpush1.msra.mxu0 %v322
        %344 = vmatprep.subr.mxu0 %v325
        %345 = vmatpush1.msra.mxu0 %v324
        %346 = vmatprep.subr.mxu0 %v327
        %347 = vmatpush1.msra.mxu0 %v326
        %348 = vmatprep.subr.mxu0 %v329
        %349 = vmatpush1.msra.mxu0 %v328
        %350 = vmatprep.subr.mxu0 %v331
        %351 = vmatpush1.msra.mxu0 %v330
        %352 = vmatprep.subr.mxu0 %v333
        %353 = vmatpush1.msra.mxu0 %v332
        %354 = vmatprep.subr.mxu0 %v335
        %355 = vmatpush1.msra.mxu0 %v334
        %356 = vmatprep.subr.mxu0 %v337
        %357 = vmatpush1.msra.mxu0 %v336
        %358 = vmatprep.subr.mxu0 0.0
        %359 = vmatpush1.msra.mxu0 0.0
        %360 = vmatprep.subr.mxu0 0.0
        %361 = vmatpush1.msra.mxu0 0.0
        %362 = vmatprep.subr.mxu0 0.0
        %363 = vmatpush1.msra.mxu0 0.0
        %364 = vmatprep.subr.mxu0 0.0
        %365 = vmatpush1.msra.mxu0 0.0
        %366 = vmatprep.subr.mxu0 0.0
        %367 = vmatpush1.msra.mxu0 0.0
        %368 = vmatprep.subr.mxu0 0.0
        %369 = vmatpush1.msra.mxu0 0.0
        %370 = vmatprep.subr.mxu0 0.0
        %371 = vmatpush1.msra.mxu0 0.0
        %372 = vmatprep.subr.mxu0 0.0
        %373 = vmatpush1.msra.mxu0 0.0
        %374 = vmatprep.subr.mxu0 0.0
        %375 = vmatpush1.msra.mxu0 0.0
        %376 = vmatprep.subr.mxu0 0.0
        %377 = vmatpush1.msra.mxu0 0.0
        %378 = vmatprep.subr.mxu0 0.0
        %379 = vmatpush1.msra.mxu0 0.0
        %380 = vmatprep.subr.mxu0 0.0
        %381 = vmatpush1.msra.mxu0 0.0
        %382 = vmatprep.subr.mxu0 0.0
        %383 = vmatpush1.msra.mxu0 0.0
        %384 = vmatprep.subr.mxu0 0.0
        %385 = vmatpush1.msra.mxu0 0.0
        %386 = vmatprep.subr.mxu0 0.0
        %387 = vmatpush1.msra.mxu0 0.0
        %388 = vmatprep.subr.mxu0 0.0
        %389 = vmatpush1.msra.mxu0 0.0
        %390 = vmatprep.subr.mxu0 0.0
        %391 = vmatpush1.msra.mxu0 0.0
        %392 = vmatprep.subr.mxu0 0.0
        %393 = vmatpush1.msra.mxu0 0.0
        %394 = vmatprep.subr.mxu0 0.0
        %395 = vmatpush1.msra.mxu0 0.0
        %396 = vmatprep.subr.mxu0 0.0
        %397 = vmatpush1.msra.mxu0 0.0
        %398 = vmatprep.subr.mxu0 0.0
        %399 = vmatpush1.msra.mxu0 0.0
        %400 = vmatprep.subr.mxu0 0.0
        %401 = vmatpush1.msra.mxu0 0.0
        %402 = vmatprep.subr.mxu0 0.0
        %403 = vmatpush1.msra.mxu0 0.0
        %404 = vmatprep.subr.mxu0 0.0
        %405 = vmatpush1.msra.mxu0 0.0
        %406 = vmatprep.mubr.f32.mxu0 0.0
        %407 = vmatmul.mubr.f32.gmra.mrb[0].mxu0 %v340
        %v408 = vpop.f32.mrb[0].mxu0
        %v409 = vadd.f32 0.0, %v408
        %v410 = vpop.f32.mrb[0].mxu0
        %v411 = vadd.f32 0.0, %v410
        %412 = vdwg.mxu0
        %v413 = vmul.f32 %v409, 1.442695
        %v414 = vpow.pop %v413
        %v415 = vmul.f32 %v411, 1.442695
        %v416 = vpow.pop %v415
        %v417 = vld [vmem:[%s277] sm:$0xff]
        %v418 = vld [vmem:[%s277 + $0x8] sm:$0xff]
        %v419 = vand.u32 2147483647, %v417
        %vm420 = vcmp.le.f32.partialorder %v419, 0.7853982
        %vm421 = vcmp.lt.s32.totalorder %v417, 0
        %v422 = vand.u32 %v417, 2139095040
        %v423 = vshrl.u32 %v422, 23
        %v424 = vsub.s32 %v423, 127
        %v425 = vand.u32 2147483647, %v417
        %v426 = vand.u32 %v425, 8388607
        %v427 = vor.u32 %v426, 8388608
        %v428 = vsub.s32 0, %v427
        %v429 = vadd.s32 %v424, 1
        %vm430 = vcmp.gt.s32.totalorder %v429, 0
        %v431 = vsel %vm430, %v429, 0
        %v432 = vshrl.u32 %v431, 5
        %v433 = vand.u32 %v431, 31
        %v434 = vsub.s32 32, %v433
        %v435 = vshrl.u32 683565275, %v434
        %v436 = vshll.u32 683565275, %v433
        %v437 = vshrl.u32 2475754826, %v434
        %v438 = vor.u32 %v436, %v437
        %v439 = vshll.u32 2475754826, %v433
        %v440 = vshrl.u32 2131351028, %v434
        %v441 = vor.u32 %v439, %v440
        %v442 = vshll.u32 2131351028, %v433
        %v443 = vshrl.u32 2102212464, %v434
        %v444 = vor.u32 %v442, %v443
        %v445 = vshll.u32 2102212464, %v433
        %v446 = vshrl.u32 920167782, %v434
        %v447 = vor.u32 %v445, %v446
        %v448 = vshll.u32 920167782, %v433
        %v449 = vshrl.u32 1326507024, %v434
        %v450 = vor.u32 %v448, %v449
        %vm451 = vcmp.lt.s32.totalorder %v432, 1
        %vm452 = vcmp.lt.s32.totalorder %v432, 2
        %vm453 = vcmp.lt.s32.totalorder %v432, 3
        %vm454 = vcmp.lt.s32.totalorder %v432, 4
        %v455 = vsel %vm451, %v435, %v438
        %v456 = vsel %vm454, %v444, 2102212464
        %v457 = vsel %vm453, %v441, %v456
        %v458 = vsel %vm452, %v455, %v457
        %v459 = vsel %vm451, %v438, %v441
        %v460 = vsel %vm454, %v447, 920167782
        %v461 = vsel %vm453, %v444, %v460
        %v462 = vsel %vm452, %v459, %v461
        %v463 = vsel %vm451, %v441, %v444
        %v464 = vsel %vm454, %v450, 1326507024
        %v465 = vsel %vm453, %v447, %v464
        %v466 = vsel %vm452, %v463, %v465
        %v467 = vshll.u32 %v427, 8
        %v468 = vmul.u32.u64.compose %v467, %v466
        %v469 = vextract.low.u32 %v468
        %v470 = vextract.high.u32 %v468
        %v471 = vmul.u32.u64.compose %v467, %v462
        %v472 = vextract.low.u32 %v471
        %v473 = vextract.high.u32 %v471
        %v474 = vmul.u32 %v467, %v458
        %v475 = vadd.s32 %v470, %v472
        %vm476 = vc.u32 %v470, %v472
        %v477 = vadd.s32 %v473, 1
        %v478 = vsel %vm476, %v477, %v473
        %v479 = vadd.s32 %v474, %v478
        %v480 = vadd.s32 %v479, 536870912
        %v481 = vshrl.u32 %v480, 30
        %v482 = vshll.u32 %v481, 30
        %v483 = vsub.s32 %v479, %v482
        %vm484 = vcmp.lt.s32.totalorder %v483, 0
        %v485 = vsub.s32 0, %v483
        %v486 = vsel %vm484, %v485, %v483
        %v487 = vclz %v486
        %v488 = vsub.s32 %v487, 2
        %vm489 = vcmp.gt.s32.totalorder 0, %v488
        %v490 = vsel %vm489, 0, %v488
        %v491 = vsub.s32 32, %v490
        %v492 = vshll.u32 %v483, %v490
        %v493 = vshrl.u32 %v475, %v491
        %v494 = vor.u32 %v492, %v493
        %v495 = vsub.s32 4294967266, %v490
        %v496 = vadd.s32 %v495, 127
        %v497 = vshll.u32 %v496, 23
        %v498 = vor.u32 4788187, %v497
        %v499 = vand.u32 2147483647, %v498
        %v501 = vcvt.s32.f32 %v494
        %v502 = vmul.f32 %v501, %v499
        %v503 = vxor.u32 %v502, 2147483648
        %v504 = vsel %vm421, %v503, %v502
        %v505 = vsub.s32 4, %v481
        %v506 = vsel %vm421, %v505, %v481
        %v507 = vsel %vm420, %v417, %v504
        %v508 = vsel %vm420, 0, %v506
        %v509 = vcosq.f32.pop %v507
        %v510 = vsinq.f32.pop %v507
        %vm511 = vweird.f32 %v417
        %v512 = vand.u32 %v508, 3
        %vm513 = vcmp.lt.s32.totalorder %v512, 2
        %vm514 = vcmp.eq.s32.totalorder %v512, 0
        %v515 = vxor.u32 %v510, 2147483648
        %v516 = vsel %vm514, %v509, %v515
        %vm517 = vcmp.eq.s32.totalorder %v512, 2
        %v518 = vxor.u32 %v509, 2147483648
        %v519 = vsel %vm517, %v518, %v510
        %v520 = vsel %vm513, %v516, %v519
        %v521 = vsel %vm511, nan, %v520
        %v522 = vand.u32 2147483647, %v418
        %vm523 = vcmp.le.f32.partialorder %v522, 0.7853982
        %vm524 = vcmp.lt.s32.totalorder %v418, 0
        %v525 = vand.u32 %v418, 2139095040
        %v526 = vshrl.u32 %v525, 23
        %v527 = vsub.s32 %v526, 127
        %v528 = vand.u32 2147483647, %v418
        %v529 = vand.u32 %v528, 8388607
        %v530 = vor.u32 %v529, 8388608
        %v531 = vsub.s32 0, %v530
        %v532 = vadd.s32 %v527, 1
        %vm533 = vcmp.gt.s32.totalorder %v532, 0
        %v534 = vsel %vm533, %v532, 0
        %v535 = vshrl.u32 %v534, 5
        %v536 = vand.u32 %v534, 31
        %v537 = vsub.s32 32, %v536
        %v538 = vshrl.u32 683565275, %v537
        %v539 = vshll.u32 683565275, %v536
        %v540 = vshrl.u32 2475754826, %v537
        %v541 = vor.u32 %v539, %v540
        %v542 = vshll.u32 2475754826, %v536
        %v543 = vshrl.u32 2131351028, %v537
        %v544 = vor.u32 %v542, %v543
        %v545 = vshll.u32 2131351028, %v536
        %v546 = vshrl.u32 2102212464, %v537
        %v547 = vor.u32 %v545, %v546
        %v548 = vshll.u32 2102212464, %v536
        %v549 = vshrl.u32 920167782, %v537
        %v550 = vor.u32 %v548, %v549
        %v551 = vshll.u32 920167782, %v536
        %v552 = vshrl.u32 1326507024, %v537
        %v553 = vor.u32 %v551, %v552
        %vm554 = vcmp.lt.s32.totalorder %v535, 1
        %vm555 = vcmp.lt.s32.totalorder %v535, 2
        %vm556 = vcmp.lt.s32.totalorder %v535, 3
        %vm557 = vcmp.lt.s32.totalorder %v535, 4
        %v558 = vsel %vm554, %v538, %v541
        %v559 = vsel %vm557, %v547, 2102212464
        %v560 = vsel %vm556, %v544, %v559
        %v561 = vsel %vm555, %v558, %v560
        %v562 = vsel %vm554, %v541, %v544
        %v563 = vsel %vm557, %v550, 920167782
        %v564 = vsel %vm556, %v547, %v563
        %v565 = vsel %vm555, %v562, %v564
        %v566 = vsel %vm554, %v544, %v547
        %v567 = vsel %vm557, %v553, 1326507024
        %v568 = vsel %vm556, %v550, %v567
        %v569 = vsel %vm555, %v566, %v568
        %v570 = vshll.u32 %v530, 8
        %v571 = vmul.u32.u64.compose %v570, %v569
        %v572 = vextract.low.u32 %v571
        %v573 = vextract.high.u32 %v571
        %v574 = vmul.u32.u64.compose %v570, %v565
        %v575 = vextract.low.u32 %v574
        %v576 = vextract.high.u32 %v574
        %v577 = vmul.u32 %v570, %v561
        %v578 = vadd.s32 %v573, %v575
        %vm579 = vc.u32 %v573, %v575
        %v580 = vadd.s32 %v576, 1
        %v581 = vsel %vm579, %v580, %v576
        %v582 = vadd.s32 %v577, %v581
        %v583 = vadd.s32 %v582, 536870912
        %v584 = vshrl.u32 %v583, 30
        %v585 = vshll.u32 %v584, 30
        %v586 = vsub.s32 %v582, %v585
        %vm587 = vcmp.lt.s32.totalorder %v586, 0
        %v588 = vsub.s32 0, %v586
        %v589 = vsel %vm587, %v588, %v586
        %v590 = vclz %v589
        %v591 = vsub.s32 %v590, 2
        %vm592 = vcmp.gt.s32.totalorder 0, %v591
        %v593 = vsel %vm592, 0, %v591
        %v594 = vsub.s32 32, %v593
        %v595 = vshll.u32 %v586, %v593
        %v596 = vshrl.u32 %v578, %v594
        %v597 = vor.u32 %v595, %v596
        %v598 = vsub.s32 4294967266, %v593
        %v599 = vadd.s32 %v598, 127
        %v600 = vshll.u32 %v599, 23
        %v601 = vor.u32 4788187, %v600
        %v602 = vand.u32 2147483647, %v601
        %v604 = vcvt.s32.f32 %v597
        %v605 = vmul.f32 %v604, %v602
        %v606 = vxor.u32 %v605, 2147483648
        %v607 = vsel %vm524, %v606, %v605
        %v608 = vsub.s32 4, %v584
        %v609 = vsel %vm524, %v608, %v584
        %v610 = vsel %vm523, %v418, %v607
        %v611 = vsel %vm523, 0, %v609
        %v612 = vcosq.f32.pop %v610
        %v613 = vsinq.f32.pop %v610
        %vm614 = vweird.f32 %v418
        %v615 = vand.u32 %v611, 3
        %vm616 = vcmp.lt.s32.totalorder %v615, 2
        %vm617 = vcmp.eq.s32.totalorder %v615, 0
        %v618 = vxor.u32 %v613, 2147483648
        %v619 = vsel %vm617, %v612, %v618
        %vm620 = vcmp.eq.s32.totalorder %v615, 2
        %v621 = vxor.u32 %v612, 2147483648
        %v622 = vsel %vm620, %v621, %v613
        %v623 = vsel %vm616, %v619, %v622
        %v624 = vsel %vm614, nan, %v623
        %v625 = vmul.f32 %v414, %v521
        %v626 = vmul.f32 %v416, %v624
        %v627 = vand.u32 2147483647, %v417
        %vm628 = vcmp.le.f32.partialorder %v627, 0.7853982
        %vm629 = vcmp.lt.s32.totalorder %v417, 0
        %v630 = vand.u32 %v417, 2139095040
        %v631 = vshrl.u32 %v630, 23
        %v632 = vsub.s32 %v631, 127
        %v633 = vand.u32 2147483647, %v417
        %v634 = vand.u32 %v633, 8388607
        %v635 = vor.u32 %v634, 8388608
        %v636 = vsub.s32 0, %v635
        %v637 = vadd.s32 %v632, 1
        %vm638 = vcmp.gt.s32.totalorder %v637, 0
        %v639 = vsel %vm638, %v637, 0
        %v640 = vshrl.u32 %v639, 5
        %v641 = vand.u32 %v639, 31
        %v642 = vsub.s32 32, %v641
        %v643 = vshrl.u32 683565275, %v642
        %v644 = vshll.u32 683565275, %v641
        %v645 = vshrl.u32 2475754826, %v642
        %v646 = vor.u32 %v644, %v645
        %v647 = vshll.u32 2475754826, %v641
        %v648 = vshrl.u32 2131351028, %v642
        %v649 = vor.u32 %v647, %v648
        %v650 = vshll.u32 2131351028, %v641
        %v651 = vshrl.u32 2102212464, %v642
        %v652 = vor.u32 %v650, %v651
        %v653 = vshll.u32 2102212464, %v641
        %v654 = vshrl.u32 920167782, %v642
        %v655 = vor.u32 %v653, %v654
        %v656 = vshll.u32 920167782, %v641
        %v657 = vshrl.u32 1326507024, %v642
        %v658 = vor.u32 %v656, %v657
        %vm659 = vcmp.lt.s32.totalorder %v640, 1
        %vm660 = vcmp.lt.s32.totalorder %v640, 2
        %vm661 = vcmp.lt.s32.totalorder %v640, 3
        %vm662 = vcmp.lt.s32.totalorder %v640, 4
        %v663 = vsel %vm659, %v643, %v646
        %v664 = vsel %vm662, %v652, 2102212464
        %v665 = vsel %vm661, %v649, %v664
        %v666 = vsel %vm660, %v663, %v665
        %v667 = vsel %vm659, %v646, %v649
        %v668 = vsel %vm662, %v655, 920167782
        %v669 = vsel %vm661, %v652, %v668
        %v670 = vsel %vm660, %v667, %v669
        %v671 = vsel %vm659, %v649, %v652
        %v672 = vsel %vm662, %v658, 1326507024
        %v673 = vsel %vm661, %v655, %v672
        %v674 = vsel %vm660, %v671, %v673
        %v675 = vshll.u32 %v635, 8
        %v676 = vmul.u32.u64.compose %v675, %v674
        %v677 = vextract.low.u32 %v676
        %v678 = vextract.high.u32 %v676
        %v679 = vmul.u32.u64.compose %v675, %v670
        %v680 = vextract.low.u32 %v679
        %v681 = vextract.high.u32 %v679
        %v682 = vmul.u32 %v675, %v666
        %v683 = vadd.s32 %v678, %v680
        %vm684 = vc.u32 %v678, %v680
        %v685 = vadd.s32 %v681, 1
        %v686 = vsel %vm684, %v685, %v681
        %v687 = vadd.s32 %v682, %v686
        %v688 = vadd.s32 %v687, 536870912
        %v689 = vshrl.u32 %v688, 30
        %v690 = vshll.u32 %v689, 30
        %v691 = vsub.s32 %v687, %v690
        %vm692 = vcmp.lt.s32.totalorder %v691, 0
        %v693 = vsub.s32 0, %v691
        %v694 = vsel %vm692, %v693, %v691
        %v695 = vclz %v694
        %v696 = vsub.s32 %v695, 2
        %vm697 = vcmp.gt.s32.totalorder 0, %v696
        %v698 = vsel %vm697, 0, %v696
        %v699 = vsub.s32 32, %v698
        %v700 = vshll.u32 %v691, %v698
        %v701 = vshrl.u32 %v683, %v699
        %v702 = vor.u32 %v700, %v701
        %v703 = vsub.s32 4294967266, %v698
        %v704 = vadd.s32 %v703, 127
        %v705 = vshll.u32 %v704, 23
        %v706 = vor.u32 4788187, %v705
        %v707 = vand.u32 2147483647, %v706
        %v709 = vcvt.s32.f32 %v702
        %v710 = vmul.f32 %v709, %v707
        %v711 = vxor.u32 %v710, 2147483648
        %v712 = vsel %vm629, %v711, %v710
        %v713 = vsub.s32 4, %v689
        %v714 = vsel %vm629, %v713, %v689
        %v715 = vsel %vm628, %v417, %v712
        %v716 = vsel %vm628, 0, %v714
        %v717 = vcosq.f32.pop %v715
        %v718 = vsinq.f32.pop %v715
        %vm719 = vweird.f32 %v417
        %v720 = vadd.s32 %v716, 3
        %v721 = vand.u32 %v720, 3
        %vm722 = vcmp.lt.s32.totalorder %v721, 2
        %vm723 = vcmp.eq.s32.totalorder %v721, 0
        %v724 = vxor.u32 %v718, 2147483648
        %v725 = vsel %vm723, %v717, %v724
        %vm726 = vcmp.eq.s32.totalorder %v721, 2
        %v727 = vxor.u32 %v717, 2147483648
        %v728 = vsel %vm726, %v727, %v718
        %v729 = vsel %vm722, %v725, %v728
        %v730 = vsel %vm719, nan, %v729
        %v731 = vand.u32 2147483647, %v418
        %vm732 = vcmp.le.f32.partialorder %v731, 0.7853982
        %vm733 = vcmp.lt.s32.totalorder %v418, 0
        %v734 = vand.u32 %v418, 2139095040
        %v735 = vshrl.u32 %v734, 23
        %v736 = vsub.s32 %v735, 127
        %v737 = vand.u32 2147483647, %v418
        %v738 = vand.u32 %v737, 8388607
        %v739 = vor.u32 %v738, 8388608
        %v740 = vsub.s32 0, %v739
        %v741 = vadd.s32 %v736, 1
        %vm742 = vcmp.gt.s32.totalorder %v741, 0
        %v743 = vsel %vm742, %v741, 0
        %v744 = vshrl.u32 %v743, 5
        %v745 = vand.u32 %v743, 31
        %v746 = vsub.s32 32, %v745
        %v747 = vshrl.u32 683565275, %v746
        %v748 = vshll.u32 683565275, %v745
        %v749 = vshrl.u32 2475754826, %v746
        %v750 = vor.u32 %v748, %v749
        %v751 = vshll.u32 2475754826, %v745
        %v752 = vshrl.u32 2131351028, %v746
        %v753 = vor.u32 %v751, %v752
        %v754 = vshll.u32 2131351028, %v745
        %v755 = vshrl.u32 2102212464, %v746
        %v756 = vor.u32 %v754, %v755
        %v757 = vshll.u32 2102212464, %v745
        %v758 = vshrl.u32 920167782, %v746
        %v759 = vor.u32 %v757, %v758
        %v760 = vshll.u32 920167782, %v745
        %v761 = vshrl.u32 1326507024, %v746
        %v762 = vor.u32 %v760, %v761
        %vm763 = vcmp.lt.s32.totalorder %v744, 1
        %vm764 = vcmp.lt.s32.totalorder %v744, 2
        %vm765 = vcmp.lt.s32.totalorder %v744, 3
        %vm766 = vcmp.lt.s32.totalorder %v744, 4
        %v767 = vsel %vm763, %v747, %v750
        %v768 = vsel %vm766, %v756, 2102212464
        %v769 = vsel %vm765, %v753, %v768
        %v770 = vsel %vm764, %v767, %v769
        %v771 = vsel %vm763, %v750, %v753
        %v772 = vsel %vm766, %v759, 920167782
        %v773 = vsel %vm765, %v756, %v772
        %v774 = vsel %vm764, %v771, %v773
        %v775 = vsel %vm763, %v753, %v756
        %v776 = vsel %vm766, %v762, 1326507024
        %v777 = vsel %vm765, %v759, %v776
        %v778 = vsel %vm764, %v775, %v777
        %v779 = vshll.u32 %v739, 8
        %v780 = vmul.u32.u64.compose %v779, %v778
        %v781 = vextract.low.u32 %v780
        %v782 = vextract.high.u32 %v780
        %v783 = vmul.u32.u64.compose %v779, %v774
        %v784 = vextract.low.u32 %v783
        %v785 = vextract.high.u32 %v783
        %v786 = vmul.u32 %v779, %v770
        %v787 = vadd.s32 %v782, %v784
        %vm788 = vc.u32 %v782, %v784
        %v789 = vadd.s32 %v785, 1
        %v790 = vsel %vm788, %v789, %v785
        %v791 = vadd.s32 %v786, %v790
        %v792 = vadd.s32 %v791, 536870912
        %v793 = vshrl.u32 %v792, 30
        %v794 = vshll.u32 %v793, 30
        %v795 = vsub.s32 %v791, %v794
        %vm796 = vcmp.lt.s32.totalorder %v795, 0
        %v797 = vsub.s32 0, %v795
        %v798 = vsel %vm796, %v797, %v795
        %v799 = vclz %v798
        %v800 = vsub.s32 %v799, 2
        %vm801 = vcmp.gt.s32.totalorder 0, %v800
        %v802 = vsel %vm801, 0, %v800
        %v803 = vsub.s32 32, %v802
        %v804 = vshll.u32 %v795, %v802
        %v805 = vshrl.u32 %v787, %v803
        %v806 = vor.u32 %v804, %v805
        %v807 = vsub.s32 4294967266, %v802
        %v808 = vadd.s32 %v807, 127
        %v809 = vshll.u32 %v808, 23
        %v810 = vor.u32 4788187, %v809
        %v811 = vand.u32 2147483647, %v810
        %v813 = vcvt.s32.f32 %v806
        %v814 = vmul.f32 %v813, %v811
        %v815 = vxor.u32 %v814, 2147483648
        %v816 = vsel %vm733, %v815, %v814
        %v817 = vsub.s32 4, %v793
        %v818 = vsel %vm733, %v817, %v793
        %v819 = vsel %vm732, %v418, %v816
        %v820 = vsel %vm732, 0, %v818
        %v821 = vcosq.f32.pop %v819
        %v822 = vsinq.f32.pop %v819
        %vm823 = vweird.f32 %v418
        %v824 = vadd.s32 %v820, 3
        %v825 = vand.u32 %v824, 3
        %vm826 = vcmp.lt.s32.totalorder %v825, 2
        %vm827 = vcmp.eq.s32.totalorder %v825, 0
        %v828 = vxor.u32 %v822, 2147483648
        %v829 = vsel %vm827, %v821, %v828
        %vm830 = vcmp.eq.s32.totalorder %v825, 2
        %v831 = vxor.u32 %v821, 2147483648
        %v832 = vsel %vm830, %v831, %v822
        %v833 = vsel %vm826, %v829, %v832
        %v834 = vsel %vm823, nan, %v833
        %v835 = vmul.f32 %v414, %v730
        %v836 = vmul.f32 %v416, %v834
        %v837 = vld [vmem:[#allocation8] sm:$0xff]
        %v838 = vld [vmem:[#allocation8 + $0x8] sm:$0xff]
        %v839 = vld [vmem:[#allocation8 + $0x10] sm:$0xff]
        %v840 = vld [vmem:[#allocation8 + $0x18] sm:$0xff]
        %v841 = vld [vmem:[#allocation8 + $0x20] sm:$0xff]
        %v842 = vld [vmem:[#allocation8 + $0x28] sm:$0xff]
        %v843 = vld [vmem:[#allocation8 + $0x30] sm:$0xff]
        %v844 = vld [vmem:[#allocation8 + $0x38] sm:$0xff]
        %v845 = vld [vmem:[#allocation8 + $0x40] sm:$0xff]
        %v846 = vld [vmem:[#allocation8 + $0x48] sm:$0xff]
        %v847 = vld [vmem:[#allocation8 + $0x50] sm:$0xff]
        %v848 = vld [vmem:[#allocation8 + $0x58] sm:$0xff]
        %v849 = vld [vmem:[#allocation8 + $0x60] sm:$0xff]
        %v850 = vld [vmem:[#allocation8 + $0x68] sm:$0xff]
        %v851 = vld [vmem:[#allocation8 + $0x70] sm:$0xff]
        %v852 = vld [vmem:[#allocation8 + $0x78] sm:$0xff]
        %v853 = vld [vmem:[#allocation8 + $0x80] sm:$0xff]
        %v854 = vld [vmem:[#allocation8 + $0x88] sm:$0xff]
        %v855 = vld [vmem:[#allocation10] sm:$0xff]
        %v856 = vld [vmem:[#allocation10 + $0x8] sm:$0xff]
        %v857 = vld [vmem:[#allocation10 + $0x10] sm:$0xff]
        %v858 = vld [vmem:[#allocation10 + $0x18] sm:$0xff]
        %v859 = vld [vmem:[#allocation10 + $0x20] sm:$0xff]
        %v860 = vld [vmem:[#allocation10 + $0x28] sm:$0xff]
        %v861 = vld [vmem:[#allocation10 + $0x30] sm:$0xff]
        %v862 = vld [vmem:[#allocation10 + $0x38] sm:$0xff]
        %v863 = vld [vmem:[#allocation10 + $0x40] sm:$0xff]
        %v864 = vld [vmem:[#allocation10 + $0x48] sm:$0xff]
        %v865 = vld [vmem:[#allocation10 + $0x50] sm:$0xff]
        %v866 = vld [vmem:[#allocation10 + $0x58] sm:$0xff]
        %v867 = vld [vmem:[#allocation10 + $0x60] sm:$0xff]
        %v868 = vld [vmem:[#allocation10 + $0x68] sm:$0xff]
        %v869 = vld [vmem:[#allocation10 + $0x70] sm:$0xff]
        %v870 = vld [vmem:[#allocation10 + $0x78] sm:$0xff]
        %v871 = vld [vmem:[#allocation10 + $0x80] sm:$0xff]
        %v872 = vld [vmem:[#allocation10 + $0x88] sm:$0xff]
        %vm873 = vcmask 130048
        %v875 = vsel %vm873, %v836, 0
        %877 = vmatprep.subr.mxu0 0.0
        %878 = vmatpush1.msra.mxu0 %v855
        %879 = vmatprep.subr.mxu0 0.0
        %880 = vmatpush1.msra.mxu0 %v856
        %881 = vmatprep.subr.mxu0 0.0
        %882 = vmatpush1.msra.mxu0 %v857
        %883 = vmatprep.subr.mxu0 0.0
        %884 = vmatpush1.msra.mxu0 %v858
        %885 = vmatprep.subr.mxu0 0.0
        %886 = vmatpush1.msra.mxu0 %v859
        %887 = vmatprep.subr.mxu0 0.0
        %888 = vmatpush1.msra.mxu0 %v860
        %889 = vmatprep.subr.mxu0 0.0
        %890 = vmatpush1.msra.mxu0 %v861
        %891 = vmatprep.subr.mxu0 0.0
        %892 = vmatpush1.msra.mxu0 %v862
        %893 = vmatprep.subr.mxu0 0.0
        %894 = vmatpush1.msra.mxu0 %v863
        %895 = vmatprep.subr.mxu0 0.0
        %896 = vmatpush1.msra.mxu0 %v864
        %897 = vmatprep.subr.mxu0 0.0
        %898 = vmatpush1.msra.mxu0 %v865
        %899 = vmatprep.subr.mxu0 0.0
        %900 = vmatpush1.msra.mxu0 %v866
        %901 = vmatprep.subr.mxu0 0.0
        %902 = vmatpush1.msra.mxu0 %v867
        %903 = vmatprep.subr.mxu0 0.0
        %904 = vmatpush1.msra.mxu0 %v868
        %905 = vmatprep.subr.mxu0 0.0
        %906 = vmatpush1.msra.mxu0 %v869
        %907 = vmatprep.subr.mxu0 0.0
        %908 = vmatpush1.msra.mxu0 %v870
        %909 = vmatprep.subr.mxu0 0.0
        %910 = vmatpush1.msra.mxu0 %v871
        %911 = vmatprep.subr.mxu0 0.0
        %912 = vmatpush1.msra.mxu0 %v872
        %913 = vmatprep.subr.mxu0 0.0
        %914 = vmatpush1.msra.mxu0 0.0
        %915 = vmatprep.subr.mxu0 0.0
        %916 = vmatpush1.msra.mxu0 0.0
        %917 = vmatprep.subr.mxu0 0.0
        %918 = vmatpush1.msra.mxu0 0.0
        %919 = vmatprep.subr.mxu0 0.0
        %920 = vmatpush1.msra.mxu0 0.0
        %921 = vmatprep.subr.mxu0 0.0
        %922 = vmatpush1.msra.mxu0 0.0
        %923 = vmatprep.subr.mxu0 0.0
        %924 = vmatpush1.msra.mxu0 0.0
        %925 = vmatprep.subr.mxu0 0.0
        %926 = vmatpush1.msra.mxu0 0.0
        %927 = vmatprep.subr.mxu0 0.0
        %928 = vmatpush1.msra.mxu0 0.0
        %929 = vmatprep.subr.mxu0 0.0
        %930 = vmatpush1.msra.mxu0 0.0
        %931 = vmatprep.subr.mxu0 0.0
        %932 = vmatpush1.msra.mxu0 0.0
        %933 = vmatprep.subr.mxu0 0.0
        %934 = vmatpush1.msra.mxu0 0.0
        %935 = vmatprep.subr.mxu0 0.0
        %936 = vmatpush1.msra.mxu0 0.0
        %937 = vmatprep.subr.mxu0 0.0
        %938 = vmatpush1.msra.mxu0 0.0
        %939 = vmatprep.subr.mxu0 0.0
        %940 = vmatpush1.msra.mxu0 0.0
        %941 = vmatprep.mubr.f32.mxu0 %v875
        %942 = vmatmul.mubr.f32.gmra.mrb[0].mxu0 %v835
        %v943 = vpop.f32.mrb[0].mxu0
        %v944 = vadd.f32 0.0, %v943
        %v945 = vpop.f32.mrb[0].mxu0
        %946 = vdwg.mxu0
        %v948 = vsel %vm873, %v626, 0
        %950 = vmatprep.subr.mxu0 0.0
        %951 = vmatpush1.msra.mxu0 %v837
        %952 = vmatprep.subr.mxu0 0.0
        %953 = vmatpush1.msra.mxu0 %v838
        %954 = vmatprep.subr.mxu0 0.0
        %955 = vmatpush1.msra.mxu0 %v839
        %956 = vmatprep.subr.mxu0 0.0
        %957 = vmatpush1.msra.mxu0 %v840
        %958 = vmatprep.subr.mxu0 0.0
        %959 = vmatpush1.msra.mxu0 %v841
        %960 = vmatprep.subr.mxu0 0.0
        %961 = vmatpush1.msra.mxu0 %v842
        %962 = vmatprep.subr.mxu0 0.0
        %963 = vmatpush1.msra.mxu0 %v843
        %964 = vmatprep.subr.mxu0 0.0
        %965 = vmatpush1.msra.mxu0 %v844
        %966 = vmatprep.subr.mxu0 0.0
        %967 = vmatpush1.msra.mxu0 %v845
        %968 = vmatprep.subr.mxu0 0.0
        %969 = vmatpush1.msra.mxu0 %v846
        %970 = vmatprep.subr.mxu0 0.0
        %971 = vmatpush1.msra.mxu0 %v847
        %972 = vmatprep.subr.mxu0 0.0
        %973 = vmatpush1.msra.mxu0 %v848
        %974 = vmatprep.subr.mxu0 0.0
        %975 = vmatpush1.msra.mxu0 %v849
        %976 = vmatprep.subr.mxu0 0.0
        %977 = vmatpush1.msra.mxu0 %v850
        %978 = vmatprep.subr.mxu0 0.0
        %979 = vmatpush1.msra.mxu0 %v851
        %980 = vmatprep.subr.mxu0 0.0
        %981 = vmatpush1.msra.mxu0 %v852
        %982 = vmatprep.subr.mxu0 0.0
        %983 = vmatpush1.msra.mxu0 %v853
        %984 = vmatprep.subr.mxu0 0.0
        %985 = vmatpush1.msra.mxu0 %v854
        %986 = vmatprep.subr.mxu0 0.0
        %987 = vmatpush1.msra.mxu0 0.0
        %988 = vmatprep.subr.mxu0 0.0
        %989 = vmatpush1.msra.mxu0 0.0
        %990 = vmatprep.subr.mxu0 0.0
        %991 = vmatpush1.msra.mxu0 0.0
        %992 = vmatprep.subr.mxu0 0.0
        %993 = vmatpush1.msra.mxu0 0.0
        %994 = vmatprep.subr.mxu0 0.0
        %995 = vmatpush1.msra.mxu0 0.0
        %996 = vmatprep.subr.mxu0 0.0
        %997 = vmatpush1.msra.mxu0 0.0
        %998 = vmatprep.subr.mxu0 0.0
        %999 = vmatpush1.msra.mxu0 0.0
        %1000 = vmatprep.subr.mxu0 0.0
        %1001 = vmatpush1.msra.mxu0 0.0
        %1002 = vmatprep.subr.mxu0 0.0
        %1003 = vmatpush1.msra.mxu0 0.0
        %1004 = vmatprep.subr.mxu0 0.0
        %1005 = vmatpush1.msra.mxu0 0.0
        %1006 = vmatprep.subr.mxu0 0.0
        %1007 = vmatpush1.msra.mxu0 0.0
        %1008 = vmatprep.subr.mxu0 0.0
        %1009 = vmatpush1.msra.mxu0 0.0
        %1010 = vmatprep.subr.mxu0 0.0
        %1011 = vmatpush1.msra.mxu0 0.0
        %1012 = vmatprep.subr.mxu0 0.0
        %1013 = vmatpush1.msra.mxu0 0.0
        %1014 = vmatprep.mubr.f32.mxu0 %v948
        %1015 = vmatmul.mubr.f32.gmra.mrb[0].mxu0 %v625
        %v1016 = vpop.f32.mrb[0].mxu0
        %v1017 = vadd.f32 %v944, %v1016
        %v1018 = vpop.f32.mrb[0].mxu0
        %1019 = vdwg.mxu0
        %1020 = vst [vmem:[%s320] sm:$0xff] %v1017
        %s1021 = sand.u32 %s149, 1
        %s1022 = scalar_lea.sflag [#allocation4], %s1021
        %s1023 = sand.u32 %s149, 1
        %s1024 = smul.addr %s1023, 8
        %s1025 = scalar_lea.vmem [#allocation11], %s1024
        // Predicated region
        $region61: #{tpu_custom_call.1} parent=39 // pred_check
          %p1026 = pneg %p159
        $region62: #{tpu_custom_call.1} parent=39 // pred_check_branch
          %1028 = sbr.rel (%p1026) target = $region64
        $region63: #{tpu_custom_call.1} parent=39 // pred_region
          %s1030 = ssub.s32 128, 128
          %1031 = vsyncadd %s1022, %s1030
          %s1032 = smul.addr %s26, 128
          %s1033 = scalar_lea.hbm %s5, %s1032
          %s1035 = sshll.u32 %s1025, 4
          %s1036 = int_to_ptr.vmem [resolvable:$true] %s1035
          %1038 = dma.vmem_to_hbm [thread:$0]  %s1036, 128, %s1033, %s1022
        $region64: #{tpu_custom_call.1} parent=39 // pred_fallthru
          _
      $region40: #{tpu_custom_call.1} parent=5 // pred_fallthru
        _
      %p1039 = scmp.le.s32.totalorder 2, %s21
      // Predicated region
      $region65: #{tpu_custom_call.1} parent=5 // pred_check
        %p1040 = pneg %p1039
      $region66: #{tpu_custom_call.1} parent=5 // pred_check_branch
        %1042 = sbr.rel (%p1040) target = $region68
      $region67: #{tpu_custom_call.1} parent=5 // pred_region
        %s1043 = ssub.s32 %s21, 2
        // Predicated region
        $region69: #{tpu_custom_call.1} parent=67 // pred_check
          %p1044 = pneg %p165
        $region70: #{tpu_custom_call.1} parent=67 // pred_check_branch
          %1046 = sbr.rel (%p1044) target = $region72
        $region71: #{tpu_custom_call.1} parent=67 // pred_region
          %s1047 = sand.u32 %s150, 1
          %s1048 = scalar_lea.sflag [#allocation4], %s1047
          %s1049 = sand.u32 %s150, 1
          %s1050 = smul.addr %s1049, 8
          %s1051 = scalar_lea.vmem [#allocation11], %s1050
          %1052 = dma.done %s1048, 128
        $region72: #{tpu_custom_call.1} parent=67 // pred_fallthru
          _
      $region68: #{tpu_custom_call.1} parent=5 // pred_fallthru
        _
    $region6: #{tpu_custom_call.1} parent=1 // loop_footer
      %s25 = sadd.s32 1, %s21
    $region7: #{tpu_custom_call.1} parent=1 // loop_footer_branch
      %20 = sbr.rel target = $region3
    $region8: #{tpu_custom_call.1} parent=1 // loop_exit
      _
    %1053 = vsyncpa [#allocation3], 1
    %s1054 = scalar_lea.sflag [#allocation3], 1
    %1055 = vsyncpa %s1054, 1
    %1056 = vsyncpa [#allocation6], 1
    %s1057 = scalar_lea.sflag [#allocation6], 1
    %1058 = vsyncpa %s1057, 1
    %1059 = vsyncpa [#allocation9], 1
    %1060 = vsyncpa [#allocation4], 1
    %s1061 = scalar_lea.sflag [#allocation4], 1
    %1062 = vsyncpa %s1061, 1

// kernel: tpu_custom_call.1
$region0: #{tpu_custom_call.1}
  #allocation0 [shape = 'u32[]', space=smem, size = 0x4, offset = 0x4, fixed_abs, tag = 'smem constant byte address 0x4 - core index']
  #allocation1 [shape = 'u32[144,128]{1,0:T(1,128)}', space=vmem, size = 0x12000, scoped, tag = 'internal scratch']
  %s0 = inlined_call_operand.hbm [shape: f32[16,64], index: 0, kind: input, shape index: {}]
  %s1 = inlined_call_operand.hbm [shape: f32[16,144], index: 1, kind: input, shape index: {}]
  %s2 = inlined_call_operand.hbm [shape: f32[64,144], index: 2, kind: input, shape index: {}]
  %s3 = inlined_call_operand.hbm [shape: f32[144,128], index: 3, kind: input, shape index: {}]
  %s4 = inlined_call_operand.hbm [shape: f32[144,128], index: 4, kind: input, shape index: {}]
  %s5 = inlined_call_operand.hbm [shape: f32[16,128], index: 5, kind: output, shape index: {}]
  %s6 = sld [smem:[#allocation0]]
  $region73: #{tpu_custom_call.1} parent=0
    _
  %s8 = ssub.s32 1, %s6
  %s9 = scalar_select 0, %s8, %s6
  $region1: #{tpu_custom_call.1} parent=0
    #allocation2 [shape = 'u8[8192]{0}', space=vmem, size = 0x2000, scoped, tag = 'input window, operand 0']
    #allocation3 [shape = 's32[2]{0}', space=sflag, size = 0x8, scoped, tag = 'scoped memory for tpu_custom_call.1']
    #allocation4 [shape = 's32[2]{0}', space=sflag, size = 0x8, scoped, tag = 'scoped memory for tpu_custom_call.1']
    #allocation5 [shape = 'u8[16384]{0}', space=vmem, size = 0x4000, scoped, tag = 'input window, operand 1']
    #allocation6 [shape = 's32[2]{0}', space=sflag, size = 0x8, scoped, tag = 'scoped memory for tpu_custom_call.1']
    #allocation7 [shape = 'u8[65536]{0}', space=vmem, size = 0x10000, scoped, tag = 'input window, operand 2, single buffered']
    #allocation8 [shape = 'u8[73728]{0}', space=vmem, size = 0x12000, scoped, tag = 'input window, operand 3, single buffered']
    #allocation9 [shape = 's32[1]{0}', space=sflag, size = 0x4, scoped, tag = 'scoped memory for tpu_custom_call.1']
    #allocation10 [shape = 'u8[73728]{0}', space=vmem, size = 0x12000, scoped, tag = 'input window, operand 4, single buffered']
    #allocation11 [shape = 'u8[8192]{0}', space=vmem, size = 0x2000, scoped, tag = 'output window, operand 0']
    %10 = vsyncpa [#allocation3], 0
    %s11 = scalar_lea.sflag [#allocation3], 1
    %12 = vsyncpa %s11, 0
    %13 = vsyncpa [#allocation6], 0
    %s14 = scalar_lea.sflag [#allocation6], 1
    %15 = vsyncpa %s14, 0
    %16 = vsyncpa [#allocation9], 0
    %17 = vsyncpa [#allocation4], 0
    %s18 = scalar_lea.sflag [#allocation4], 1
    %19 = vsyncpa %s18, 0
    loop: start=0, step=1, limit=4
    $region2: #{tpu_custom_call.1} parent=1 // loop_pre_header
      _
    $region3: #{tpu_custom_call.1} parent=1 // loop_header
      %s21 = sphi 0, %s25
      %p22 = scmp.ge.s32.totalorder %s21, 4
      %s31 = sphi 0, %s33
      %s34 = sphi 0, %s31
      %s35 = sphi 0, %s34
      %s51 = sphi 0, %s35
      %s57 = sphi 0, %s59
      %s60 = sphi 0, %s57
      %s61 = sphi 0, %s60
      %s77 = sphi 0, %s61
      %s81 = sphi 0, %s81
      %s83 = sphi 0, %s81
      %s84 = sphi 0, %s83
      %s98 = sphi 0, %s84
      %s102 = sphi 0, %s102
      %s104 = sphi 0, %s102
      %s105 = sphi 0, %s104
      %s119 = sphi 0, %s105
      %s123 = sphi 0, %s123
      %s125 = sphi 0, %s123
      %s126 = sphi 0, %s125
      %s140 = sphi 0, %s126
      %s146 = sphi 0, %s148
      %s149 = sphi 0, %s146
      %s150 = sphi 0, %s149
      %s166 = sphi 0, %s150
    $region4: #{tpu_custom_call.1} parent=1 // loop_header_branch
      %24 = sbr.rel (%p22) target = $region8
    $region5: #{tpu_custom_call.1} parent=1 // loop_body
      %s26 = ssub.s32 %s21, 1
      %s27 = ssub.s32 %s21, 2
      %s28 = sadd.s32 %s21, 1
      %s29 = ssub.s32 %s21, %s28
      %p30 = scmp.eq.s32.totalorder %s29, 0
      %s32 = sadd.s32 %s31, 1
      %s33 = scalar_select %p30, %s31, %s32
      %p36 = pneg %p30
      %p37 = scmp.eq.s32.totalorder %s21, 1
      %p38 = por %p36, %p37
      %p39 = scmp.ne.s32.totalorder %s31, %s34
      %p40 = scmp.eq.s32.totalorder %s21, 0
      %p41 = por %p39, %p40
      %p42 = scmp.ne.s32.totalorder %s31, %s34
      %p43 = scmp.eq.s32.totalorder %s26, 1
      %p44 = por %p42, %p43
      %p45 = scmp.ne.s32.totalorder %s34, %s35
      %p46 = scmp.eq.s32.totalorder %s26, 0
      %p47 = por %p45, %p46
      %p48 = scmp.ne.s32.totalorder %s34, %s35
      %p49 = scmp.eq.s32.totalorder %s27, 1
      %p50 = por %p48, %p49
      %p52 = scmp.ne.s32.totalorder %s35, %s51
      %p53 = scmp.eq.s32.totalorder %s27, 0
      %p54 = por %p52, %p53
      %s55 = ssub.s32 %s21, %s28
      %p56 = scmp.eq.s32.totalorder %s55, 0
      %s58 = sadd.s32 %s57, 1
      %s59 = scalar_select %p56, %s57, %s58
      %p62 = pneg %p56
      %p63 = scmp.eq.s32.totalorder %s21, 1
      %p64 = por %p62, %p63
      %p65 = scmp.ne.s32.totalorder %s57, %s60
      %p66 = scmp.eq.s32.totalorder %s21, 0
      %p67 = por %p65, %p66
      %p68 = scmp.ne.s32.totalorder %s57, %s60
      %p69 = scmp.eq.s32.totalorder %s26, 1
      %p70 = por %p68, %p69
      %p71 = scmp.ne.s32.totalorder %s60, %s61
      %p72 = scmp.eq.s32.totalorder %s26, 0
      %p73 = por %p71, %p72
      %p74 = scmp.ne.s32.totalorder %s60, %s61
      %p75 = scmp.eq.s32.totalorder %s27, 1
      %p76 = por %p74, %p75
      %p78 = scmp.ne.s32.totalorder %s61, %s77
      %p79 = scmp.eq.s32.totalorder %s27, 0
      %p80 = por %p78, %p79
      %s82 = sadd.s32 %s81, 1
      %p85 = scmp.eq.s32.totalorder %s21, 1
      %p86 = scmp.ne.s32.totalorder %s81, %s83
      %p87 = scmp.eq.s32.totalorder %s21, 0
      %p88 = por %p86, %p87
      %p89 = scmp.ne.s32.totalorder %s81, %s83
      %p90 = scmp.eq.s32.totalorder %s26, 1
      %p91 = por %p89, %p90
      %p92 = scmp.ne.s32.totalorder %s83, %s84
      %p93 = scmp.eq.s32.totalorder %s26, 0
      %p94 = por %p92, %p93
      %p95 = scmp.ne.s32.totalorder %s83, %s84
      %p96 = scmp.eq.s32.totalorder %s27, 1
      %p97 = por %p95, %p96
      %p99 = scmp.ne.s32.totalorder %s84, %s98
      %p100 = scmp.eq.s32.totalorder %s27, 0
      %p101 = por %p99, %p100
      %s103 = sadd.s32 %s102, 1
      %p106 = scmp.eq.s32.totalorder %s21, 1
      %p107 = scmp.ne.s32.totalorder %s102, %s104
      %p108 = scmp.eq.s32.totalorder %s21, 0
      %p109 = por %p107, %p108
      %p110 = scmp.ne.s32.totalorder %s102, %s104
      %p111 = scmp.eq.s32.totalorder %s26, 1
      %p112 = por %p110, %p111
      %p113 = scmp.ne.s32.totalorder %s104, %s105
      %p114 = scmp.eq.s32.totalorder %s26, 0
      %p115 = por %p113, %p114
      %p116 = scmp.ne.s32.totalorder %s104, %s105
      %p117 = scmp.eq.s32.totalorder %s27, 1
      %p118 = por %p116, %p117
      %p120 = scmp.ne.s32.totalorder %s105, %s119
      %p121 = scmp.eq.s32.totalorder %s27, 0
      %p122 = por %p120, %p121
      %s124 = sadd.s32 %s123, 1
      %p127 = scmp.eq.s32.totalorder %s21, 1
      %p128 = scmp.ne.s32.totalorder %s123, %s125
      %p129 = scmp.eq.s32.totalorder %s21, 0
      %p130 = por %p128, %p129
      %p131 = scmp.ne.s32.totalorder %s123, %s125
      %p132 = scmp.eq.s32.totalorder %s26, 1
      %p133 = por %p131, %p132
      %p134 = scmp.ne.s32.totalorder %s125, %s126
      %p135 = scmp.eq.s32.totalorder %s26, 0
      %p136 = por %p134, %p135
      %p137 = scmp.ne.s32.totalorder %s125, %s126
      %p138 = scmp.eq.s32.totalorder %s27, 1
      %p139 = por %p137, %p138
      %p141 = scmp.ne.s32.totalorder %s126, %s140
      %p142 = scmp.eq.s32.totalorder %s27, 0
      %p143 = por %p141, %p142
      %s144 = ssub.s32 %s21, %s28
      %p145 = scmp.eq.s32.totalorder %s144, 0
      %s147 = sadd.s32 %s146, 1
      %s148 = scalar_select %p145, %s146, %s147
      %p151 = pneg %p145
      %p152 = scmp.eq.s32.totalorder %s21, 1
      %p153 = por %p151, %p152
      %p154 = scmp.ne.s32.totalorder %s146, %s149
      %p155 = scmp.eq.s32.totalorder %s21, 0
      %p156 = por %p154, %p155
      %p157 = scmp.ne.s32.totalorder %s146, %s149
      %p158 = scmp.eq.s32.totalorder %s26, 1
      %p159 = por %p157, %p158
      %p160 = scmp.ne.s32.totalorder %s149, %s150
      %p161 = scmp.eq.s32.totalorder %s26, 0
      %p162 = por %p160, %p161
      %p163 = scmp.ne.s32.totalorder %s149, %s150
      %p164 = scmp.eq.s32.totalorder %s27, 1
      %p165 = por %p163, %p164
      %p167 = scmp.ne.s32.totalorder %s150, %s166
      %p168 = scmp.eq.s32.totalorder %s27, 0
      %p169 = por %p167, %p168
      %p170 = scmp.le.s32.totalorder 1, %s21
      %p171 = scmp.lt.s32.totalorder %s21, 3
      %p172 = pnand %p170, %p171
      %p173 = pneg %p172
      // Predicated region
      $region9: #{tpu_custom_call.1} parent=5 // pred_check
        _
      $region10: #{tpu_custom_call.1} parent=5 // pred_check_branch
        %175 = sbr.rel (%p172) target = $region12
      $region11: #{tpu_custom_call.1} parent=5 // pred_region
        %s176 = ssub.s32 %s21, 1
        // Predicated region
        $region13: #{tpu_custom_call.1} parent=11 // pred_check
          %p177 = pneg %p94
        $region14: #{tpu_custom_call.1} parent=11 // pred_check_branch
          %179 = sbr.rel (%p177) target = $region16
        $region15: #{tpu_custom_call.1} parent=11 // pred_region
          %s181 = ssub.s32 2048, 2048
          %182 = vsyncadd [#allocation6], %s181
          %s183 = sshll.u32 [#allocation7], 4
          %s184 = int_to_ptr.vmem [resolvable:$true] %s183
          %189 = dma.hbm_to_vmem [thread:$0]  %s2, 2048, %s184, [#allocation6], 256, 256, 16
        $region16: #{tpu_custom_call.1} parent=11 // pred_fallthru
          _
        // Predicated region
        $region17: #{tpu_custom_call.1} parent=11 // pred_check
          %p190 = pneg %p115
        $region18: #{tpu_custom_call.1} parent=11 // pred_check_branch
          %192 = sbr.rel (%p190) target = $region20
        $region19: #{tpu_custom_call.1} parent=11 // pred_region
          %s194 = ssub.s32 2304, 2304
          %195 = vsyncadd [#allocation9], %s194
          %s196 = sshll.u32 [#allocation8], 4
          %s197 = int_to_ptr.vmem [resolvable:$true] %s196
          %202 = dma.hbm_to_vmem [thread:$0]  %s3, 2304, %s197, [#allocation9], 128, 128, 8
        $region20: #{tpu_custom_call.1} parent=11 // pred_fallthru
          _
        // Predicated region
        $region21: #{tpu_custom_call.1} parent=11 // pred_check
          %p203 = pneg %p136
        $region22: #{tpu_custom_call.1} parent=11 // pred_check_branch
          %205 = sbr.rel (%p203) target = $region24
        $region23: #{tpu_custom_call.1} parent=11 // pred_region
          %s207 = ssub.s32 2304, 2304
          %208 = vsyncadd [#allocation9], %s207
          %s209 = sshll.u32 [#allocation10], 4
          %s210 = int_to_ptr.vmem [resolvable:$true] %s209
          %215 = dma.hbm_to_vmem [thread:$0]  %s4, 2304, %s210, [#allocation9], 128, 128, 8
        $region24: #{tpu_custom_call.1} parent=11 // pred_fallthru
          _
      $region12: #{tpu_custom_call.1} parent=5 // pred_fallthru
        _
      %p216 = scmp.lt.s32.totalorder %s21, 2
      // Predicated region
      $region25: #{tpu_custom_call.1} parent=5 // pred_check
        %p217 = pneg %p216
      $region26: #{tpu_custom_call.1} parent=5 // pred_check_branch
        %219 = sbr.rel (%p217) target = $region28
      $region27: #{tpu_custom_call.1} parent=5 // pred_region
        // Predicated region
        $region29: #{tpu_custom_call.1} parent=27 // pred_check
          %p220 = pneg %p41
        $region30: #{tpu_custom_call.1} parent=27 // pred_check_branch
          %222 = sbr.rel (%p220) target = $region32
        $region31: #{tpu_custom_call.1} parent=27 // pred_region
          %s223 = sand.u32 %s31, 1
          %s224 = scalar_lea.sflag [#allocation3], %s223
          %s225 = sand.u32 %s31, 1
          %s226 = smul.addr %s225, 8
          %s227 = scalar_lea.vmem [#allocation2], %s226
          %s229 = ssub.s32 128, 128
          %230 = vsyncadd %s224, %s229
          %s231 = smul.addr %s21, 128
          %s232 = scalar_lea.hbm %s0, %s231
          %s234 = sshll.u32 %s227, 4
          %s235 = int_to_ptr.vmem [resolvable:$true] %s234
          %237 = dma.hbm_to_vmem [thread:$0]  %s232, 128, %s235, %s224
        $region32: #{tpu_custom_call.1} parent=27 // pred_fallthru
          _
        // Predicated region
        $region33: #{tpu_custom_call.1} parent=27 // pred_check
          %p238 = pneg %p67
        $region34: #{tpu_custom_call.1} parent=27 // pred_check_branch
          %240 = sbr.rel (%p238) target = $region36
        $region35: #{tpu_custom_call.1} parent=27 // pred_region
          %s241 = sand.u32 %s21, 1
          %s242 = scalar_lea.sflag [#allocation6], %s241
          %s243 = sand.u32 %s57, 1
          %s244 = smul.addr %s243, 16
          %s245 = scalar_lea.vmem [#allocation5], %s244
          %s247 = ssub.s32 256, 256
          %248 = vsyncadd %s242, %s247
          %s249 = smul.addr %s21, 2
          %s250 = smul.addr %s249, 128
          %s251 = scalar_lea.hbm %s1, %s250
          %s253 = sshll.u32 %s245, 4
          %s254 = int_to_ptr.vmem [resolvable:$true] %s253
          %256 = dma.hbm_to_vmem [thread:$0]  %s251, 256, %s254, %s242
        $region36: #{tpu_custom_call.1} parent=27 // pred_fallthru
          _
      $region28: #{tpu_custom_call.1} parent=5 // pred_fallthru
        _
      %p257 = scmp.le.s32.totalorder 1, %s21
      %p258 = scmp.lt.s32.totalorder %s21, 3
      %p259 = pnand %p257, %p258
      %p260 = pneg %p259
      // Predicated region
      $region37: #{tpu_custom_call.1} parent=5 // pred_check
        _
      $region38: #{tpu_custom_call.1} parent=5 // pred_check_branch
        %262 = sbr.rel (%p259) target = $region40
      $region39: #{tpu_custom_call.1} parent=5 // pred_region
        %s263 = ssub.s32 %s21, 1
        %s264 = sand.u32 %s34, 1
        %s265 = scalar_lea.sflag [#allocation3], %s264
        %s266 = sand.u32 %s34, 1
        %s267 = smul.addr %s266, 8
        %s268 = scalar_lea.vmem [#allocation2], %s267
        // Predicated region
        $region41: #{tpu_custom_call.1} parent=39 // pred_check
          %p269 = pneg %p47
        $region42: #{tpu_custom_call.1} parent=39 // pred_check_branch
          %271 = sbr.rel (%p269) target = $region44
        $region43: #{tpu_custom_call.1} parent=39 // pred_region
          %272 = dma.done %s265, 128
        $region44: #{tpu_custom_call.1} parent=39 // pred_fallthru
          _
        %s273 = sand.u32 %s26, 1
        %s274 = scalar_lea.sflag [#allocation6], %s273
        %s275 = sand.u32 %s60, 1
        %s276 = smul.addr %s275, 16
        %s277 = scalar_lea.vmem [#allocation5], %s276
        // Predicated region
        $region45: #{tpu_custom_call.1} parent=39 // pred_check
          %p278 = pneg %p73
        $region46: #{tpu_custom_call.1} parent=39 // pred_check_branch
          %280 = sbr.rel (%p278) target = $region48
        $region47: #{tpu_custom_call.1} parent=39 // pred_region
          %281 = dma.done %s274, 256
        $region48: #{tpu_custom_call.1} parent=39 // pred_fallthru
          _
        // Predicated region
        $region49: #{tpu_custom_call.1} parent=39 // pred_check
          %p282 = pneg %p94
        $region50: #{tpu_custom_call.1} parent=39 // pred_check_branch
          %284 = sbr.rel (%p282) target = $region52
        $region51: #{tpu_custom_call.1} parent=39 // pred_region
          %285 = dma.done [#allocation6], 2048
        $region52: #{tpu_custom_call.1} parent=39 // pred_fallthru
          _
        // Predicated region
        $region53: #{tpu_custom_call.1} parent=39 // pred_check
          %p286 = pneg %p115
        $region54: #{tpu_custom_call.1} parent=39 // pred_check_branch
          %288 = sbr.rel (%p286) target = $region56
        $region55: #{tpu_custom_call.1} parent=39 // pred_region
          %289 = dma.done [#allocation9], 2304
        $region56: #{tpu_custom_call.1} parent=39 // pred_fallthru
          _
        // Predicated region
        $region57: #{tpu_custom_call.1} parent=39 // pred_check
          %p290 = pneg %p136
        $region58: #{tpu_custom_call.1} parent=39 // pred_check_branch
          %292 = sbr.rel (%p290) target = $region60
        $region59: #{tpu_custom_call.1} parent=39 // pred_region
          %293 = dma.done [#allocation9], 2304
        $region60: #{tpu_custom_call.1} parent=39 // pred_fallthru
          _
        %s294 = sand.u32 %s34, 1
        %s295 = scalar_lea.sflag [#allocation3], %s294
        %s296 = sand.u32 %s34, 1
        %s297 = smul.addr %s296, 8
        %s298 = scalar_lea.vmem [#allocation2], %s297
        %p299 = pneg %p47
        %p300 = pneg %p44
        %s301 = sand.u32 %s26, 1
        %s302 = scalar_lea.sflag [#allocation6], %s301
        %s303 = sand.u32 %s60, 1
        %s304 = smul.addr %s303, 16
        %s305 = scalar_lea.vmem [#allocation5], %s304
        %p306 = pneg %p73
        %p307 = pneg %p70
        %p308 = pneg %p94
        %p309 = pneg %p91
        %p310 = pneg %p115
        %p311 = pneg %p112
        %p312 = pneg %p136
        %p313 = pneg %p133
        %p314 = pneg %p162
        %p315 = pneg %p159
        %s316 = sand.u32 %s149, 1
        %s317 = scalar_lea.sflag [#allocation4], %s316
        %s318 = sand.u32 %s149, 1
        %s319 = smul.addr %s318, 8
        %s320 = scalar_lea.vmem [#allocation11], %s319
        %v321 = vld [vmem:[%s268] sm:$0xff]
        %v322 = vld [vmem:[#allocation7] sm:$0xff]
        %v323 = vld [vmem:[#allocation7 + $0x8] sm:$0xff]
        %v324 = vld [vmem:[#allocation7 + $0x10] sm:$0xff]
        %v325 = vld [vmem:[#allocation7 + $0x18] sm:$0xff]
        %v326 = vld [vmem:[#allocation7 + $0x20] sm:$0xff]
        %v327 = vld [vmem:[#allocation7 + $0x28] sm:$0xff]
        %v328 = vld [vmem:[#allocation7 + $0x30] sm:$0xff]
        %v329 = vld [vmem:[#allocation7 + $0x38] sm:$0xff]
        %v330 = vld [vmem:[#allocation7 + $0x40] sm:$0xff]
        %v331 = vld [vmem:[#allocation7 + $0x48] sm:$0xff]
        %v332 = vld [vmem:[#allocation7 + $0x50] sm:$0xff]
        %v333 = vld [vmem:[#allocation7 + $0x58] sm:$0xff]
        %v334 = vld [vmem:[#allocation7 + $0x60] sm:$0xff]
        %v335 = vld [vmem:[#allocation7 + $0x68] sm:$0xff]
        %v336 = vld [vmem:[#allocation7 + $0x70] sm:$0xff]
        %v337 = vld [vmem:[#allocation7 + $0x78] sm:$0xff]
        %vm338 = vcmask 523264
        %v340 = vsel %vm338, %v321, 0
        %342 = vmatprep.subr.mxu0 %v323
        %343 = vmatpush1.msra.mxu0 %v322
        %344 = vmatprep.subr.mxu0 %v325
        %345 = vmatpush1.msra.mxu0 %v324
        %346 = vmatprep.subr.mxu0 %v327
        %347 = vmatpush1.msra.mxu0 %v326
        %348 = vmatprep.subr.mxu0 %v329
        %349 = vmatpush1.msra.mxu0 %v328
        %350 = vmatprep.subr.mxu0 %v331
        %351 = vmatpush1.msra.mxu0 %v330
        %352 = vmatprep.subr.mxu0 %v333
        %353 = vmatpush1.msra.mxu0 %v332
        %354 = vmatprep.subr.mxu0 %v335
        %355 = vmatpush1.msra.mxu0 %v334
        %356 = vmatprep.subr.mxu0 %v337
        %357 = vmatpush1.msra.mxu0 %v336
        %358 = vmatprep.subr.mxu0 0.0
        %359 = vmatpush1.msra.mxu0 0.0
        %360 = vmatprep.subr.mxu0 0.0
        %361 = vmatpush1.msra.mxu0 0.0
        %362 = vmatprep.subr.mxu0 0.0
        %363 = vmatpush1.msra.mxu0 0.0
        %364 = vmatprep.subr.mxu0 0.0
        %365 = vmatpush1.msra.mxu0 0.0
        %366 = vmatprep.subr.mxu0 0.0
        %367 = vmatpush1.msra.mxu0 0.0
        %368 = vmatprep.subr.mxu0 0.0
        %369 = vmatpush1.msra.mxu0 0.0
        %370 = vmatprep.subr.mxu0 0.0
        %371 = vmatpush1.msra.mxu0 0.0
        %372 = vmatprep.subr.mxu0 0.0
        %373 = vmatpush1.msra.mxu0 0.0
        %374 = vmatprep.subr.mxu0 0.0
        %375 = vmatpush1.msra.mxu0 0.0
        %376 = vmatprep.subr.mxu0 0.0
        %377 = vmatpush1.msra.mxu0 0.0
        %378 = vmatprep.subr.mxu0 0.0
        %379 = vmatpush1.msra.mxu0 0.0
        %380 = vmatprep.subr.mxu0 0.0
        %381 = vmatpush1.msra.mxu0 0.0
        %382 = vmatprep.subr.mxu0 0.0
        %383 = vmatpush1.msra.mxu0 0.0
        %384 = vmatprep.subr.mxu0 0.0
        %385 = vmatpush1.msra.mxu0 0.0
        %386 = vmatprep.subr.mxu0 0.0
        %387 = vmatpush1.msra.mxu0 0.0
        %388 = vmatprep.subr.mxu0 0.0
        %389 = vmatpush1.msra.mxu0 0.0
        %390 = vmatprep.subr.mxu0 0.0
        %391 = vmatpush1.msra.mxu0 0.0
        %392 = vmatprep.subr.mxu0 0.0
        %393 = vmatpush1.msra.mxu0 0.0
        %394 = vmatprep.subr.mxu0 0.0
        %395 = vmatpush1.msra.mxu0 0.0
        %396 = vmatprep.subr.mxu0 0.0
        %397 = vmatpush1.msra.mxu0 0.0
        %398 = vmatprep.subr.mxu0 0.0
        %399 = vmatpush1.msra.mxu0 0.0
        %400 = vmatprep.subr.mxu0 0.0
        %401 = vmatpush1.msra.mxu0 0.0
        %402 = vmatprep.subr.mxu0 0.0
        %403 = vmatpush1.msra.mxu0 0.0
        %404 = vmatprep.subr.mxu0 0.0
        %405 = vmatpush1.msra.mxu0 0.0
        %406 = vmatprep.mubr.f32.mxu0 0.0
        %407 = vmatmul.mubr.f32.gmra.mrb[0].mxu0 %v340
        %v408 = vpop.f32.mrb[0].mxu0
        %v409 = vadd.f32 0.0, %v408
        %v410 = vpop.f32.mrb[0].mxu0
        %v411 = vadd.f32 0.0, %v410
        %412 = vdwg.mxu0
        %v413 = vmul.f32 %v409, 1.442695
        %v414 = vpow.pop %v413
        %v415 = vmul.f32 %v411, 1.442695
        %v416 = vpow.pop %v415
        %v417 = vld [vmem:[%s277] sm:$0xff]
        %v418 = vld [vmem:[%s277 + $0x8] sm:$0xff]
        %v419 = vand.u32 2147483647, %v417
        %vm420 = vcmp.le.f32.partialorder %v419, 0.7853982
        %vm421 = vcmp.lt.s32.totalorder %v417, 0
        %v422 = vand.u32 %v417, 2139095040
        %v423 = vshrl.u32 %v422, 23
        %v424 = vsub.s32 %v423, 127
        %v425 = vand.u32 2147483647, %v417
        %v426 = vand.u32 %v425, 8388607
        %v427 = vor.u32 %v426, 8388608
        %v428 = vsub.s32 0, %v427
        %v429 = vadd.s32 %v424, 1
        %vm430 = vcmp.gt.s32.totalorder %v429, 0
        %v431 = vsel %vm430, %v429, 0
        %v432 = vshrl.u32 %v431, 5
        %v433 = vand.u32 %v431, 31
        %v434 = vsub.s32 32, %v433
        %v435 = vshrl.u32 683565275, %v434
        %v436 = vshll.u32 683565275, %v433
        %v437 = vshrl.u32 2475754826, %v434
        %v438 = vor.u32 %v436, %v437
        %v439 = vshll.u32 2475754826, %v433
        %v440 = vshrl.u32 2131351028, %v434
        %v441 = vor.u32 %v439, %v440
        %v442 = vshll.u32 2131351028, %v433
        %v443 = vshrl.u32 2102212464, %v434
        %v444 = vor.u32 %v442, %v443
        %v445 = vshll.u32 2102212464, %v433
        %v446 = vshrl.u32 920167782, %v434
        %v447 = vor.u32 %v445, %v446
        %v448 = vshll.u32 920167782, %v433
        %v449 = vshrl.u32 1326507024, %v434
        %v450 = vor.u32 %v448, %v449
        %vm451 = vcmp.lt.s32.totalorder %v432, 1
        %vm452 = vcmp.lt.s32.totalorder %v432, 2
        %vm453 = vcmp.lt.s32.totalorder %v432, 3
        %vm454 = vcmp.lt.s32.totalorder %v432, 4
        %v455 = vsel %vm451, %v435, %v438
        %v456 = vsel %vm454, %v444, 2102212464
        %v457 = vsel %vm453, %v441, %v456
        %v458 = vsel %vm452, %v455, %v457
        %v459 = vsel %vm451, %v438, %v441
        %v460 = vsel %vm454, %v447, 920167782
        %v461 = vsel %vm453, %v444, %v460
        %v462 = vsel %vm452, %v459, %v461
        %v463 = vsel %vm451, %v441, %v444
        %v464 = vsel %vm454, %v450, 1326507024
        %v465 = vsel %vm453, %v447, %v464
        %v466 = vsel %vm452, %v463, %v465
        %v467 = vshll.u32 %v427, 8
        %v468 = vmul.u32.u64.compose %v467, %v466
        %v469 = vextract.low.u32 %v468
        %v470 = vextract.high.u32 %v468
        %v471 = vmul.u32.u64.compose %v467, %v462
        %v472 = vextract.low.u32 %v471
        %v473 = vextract.high.u32 %v471
        %v474 = vmul.u32 %v467, %v458
        %v475 = vadd.s32 %v470, %v472
        %vm476 = vc.u32 %v470, %v472
        %v477 = vadd.s32 %v473, 1
        %v478 = vsel %vm476, %v477, %v473
        %v479 = vadd.s32 %v474, %v478
        %v480 = vadd.s32 %v479, 536870912
        %v481 = vshrl.u32 %v480, 30
        %v482 = vshll.u32 %v481, 30
        %v483 = vsub.s32 %v479, %v482
        %vm484 = vcmp.lt.s32.totalorder %v483, 0
        %v485 = vsub.s32 0, %v483
        %v486 = vsel %vm484, %v485, %v483
        %v487 = vclz %v486
        %v488 = vsub.s32 %v487, 2
        %vm489 = vcmp.gt.s32.totalorder 0, %v488
        %v490 = vsel %vm489, 0, %v488
        %v491 = vsub.s32 32, %v490
        %v492 = vshll.u32 %v483, %v490
        %v493 = vshrl.u32 %v475, %v491
        %v494 = vor.u32 %v492, %v493
        %v495 = vsub.s32 4294967266, %v490
        %v496 = vadd.s32 %v495, 127
        %v497 = vshll.u32 %v496, 23
        %v498 = vor.u32 4788187, %v497
        %v499 = vand.u32 2147483647, %v498
        %v501 = vcvt.s32.f32 %v494
        %v502 = vmul.f32 %v501, %v499
        %v503 = vxor.u32 %v502, 2147483648
        %v504 = vsel %vm421, %v503, %v502
        %v505 = vsub.s32 4, %v481
        %v506 = vsel %vm421, %v505, %v481
        %v507 = vsel %vm420, %v417, %v504
        %v508 = vsel %vm420, 0, %v506
        %v509 = vcosq.f32.pop %v507
        %v510 = vsinq.f32.pop %v507
        %vm511 = vweird.f32 %v417
        %v512 = vand.u32 %v508, 3
        %vm513 = vcmp.lt.s32.totalorder %v512, 2
        %vm514 = vcmp.eq.s32.totalorder %v512, 0
        %v515 = vxor.u32 %v510, 2147483648
        %v516 = vsel %vm514, %v509, %v515
        %vm517 = vcmp.eq.s32.totalorder %v512, 2
        %v518 = vxor.u32 %v509, 2147483648
        %v519 = vsel %vm517, %v518, %v510
        %v520 = vsel %vm513, %v516, %v519
        %v521 = vsel %vm511, nan, %v520
        %v522 = vand.u32 2147483647, %v418
        %vm523 = vcmp.le.f32.partialorder %v522, 0.7853982
        %vm524 = vcmp.lt.s32.totalorder %v418, 0
        %v525 = vand.u32 %v418, 2139095040
        %v526 = vshrl.u32 %v525, 23
        %v527 = vsub.s32 %v526, 127
        %v528 = vand.u32 2147483647, %v418
        %v529 = vand.u32 %v528, 8388607
        %v530 = vor.u32 %v529, 8388608
        %v531 = vsub.s32 0, %v530
        %v532 = vadd.s32 %v527, 1
        %vm533 = vcmp.gt.s32.totalorder %v532, 0
        %v534 = vsel %vm533, %v532, 0
        %v535 = vshrl.u32 %v534, 5
        %v536 = vand.u32 %v534, 31
        %v537 = vsub.s32 32, %v536
        %v538 = vshrl.u32 683565275, %v537
        %v539 = vshll.u32 683565275, %v536
        %v540 = vshrl.u32 2475754826, %v537
        %v541 = vor.u32 %v539, %v540
        %v542 = vshll.u32 2475754826, %v536
        %v543 = vshrl.u32 2131351028, %v537
        %v544 = vor.u32 %v542, %v543
        %v545 = vshll.u32 2131351028, %v536
        %v546 = vshrl.u32 2102212464, %v537
        %v547 = vor.u32 %v545, %v546
        %v548 = vshll.u32 2102212464, %v536
        %v549 = vshrl.u32 920167782, %v537
        %v550 = vor.u32 %v548, %v549
        %v551 = vshll.u32 920167782, %v536
        %v552 = vshrl.u32 1326507024, %v537
        %v553 = vor.u32 %v551, %v552
        %vm554 = vcmp.lt.s32.totalorder %v535, 1
        %vm555 = vcmp.lt.s32.totalorder %v535, 2
        %vm556 = vcmp.lt.s32.totalorder %v535, 3
        %vm557 = vcmp.lt.s32.totalorder %v535, 4
        %v558 = vsel %vm554, %v538, %v541
        %v559 = vsel %vm557, %v547, 2102212464
        %v560 = vsel %vm556, %v544, %v559
        %v561 = vsel %vm555, %v558, %v560
        %v562 = vsel %vm554, %v541, %v544
        %v563 = vsel %vm557, %v550, 920167782
        %v564 = vsel %vm556, %v547, %v563
        %v565 = vsel %vm555, %v562, %v564
        %v566 = vsel %vm554, %v544, %v547
        %v567 = vsel %vm557, %v553, 1326507024
        %v568 = vsel %vm556, %v550, %v567
        %v569 = vsel %vm555, %v566, %v568
        %v570 = vshll.u32 %v530, 8
        %v571 = vmul.u32.u64.compose %v570, %v569
        %v572 = vextract.low.u32 %v571
        %v573 = vextract.high.u32 %v571
        %v574 = vmul.u32.u64.compose %v570, %v565
        %v575 = vextract.low.u32 %v574
        %v576 = vextract.high.u32 %v574
        %v577 = vmul.u32 %v570, %v561
        %v578 = vadd.s32 %v573, %v575
        %vm579 = vc.u32 %v573, %v575
        %v580 = vadd.s32 %v576, 1
        %v581 = vsel %vm579, %v580, %v576
        %v582 = vadd.s32 %v577, %v581
        %v583 = vadd.s32 %v582, 536870912
        %v584 = vshrl.u32 %v583, 30
        %v585 = vshll.u32 %v584, 30
        %v586 = vsub.s32 %v582, %v585
        %vm587 = vcmp.lt.s32.totalorder %v586, 0
        %v588 = vsub.s32 0, %v586
        %v589 = vsel %vm587, %v588, %v586
        %v590 = vclz %v589
        %v591 = vsub.s32 %v590, 2
        %vm592 = vcmp.gt.s32.totalorder 0, %v591
        %v593 = vsel %vm592, 0, %v591
        %v594 = vsub.s32 32, %v593
        %v595 = vshll.u32 %v586, %v593
        %v596 = vshrl.u32 %v578, %v594
        %v597 = vor.u32 %v595, %v596
        %v598 = vsub.s32 4294967266, %v593
        %v599 = vadd.s32 %v598, 127
        %v600 = vshll.u32 %v599, 23
        %v601 = vor.u32 4788187, %v600
        %v602 = vand.u32 2147483647, %v601
        %v604 = vcvt.s32.f32 %v597
        %v605 = vmul.f32 %v604, %v602
        %v606 = vxor.u32 %v605, 2147483648
        %v607 = vsel %vm524, %v606, %v605
        %v608 = vsub.s32 4, %v584
        %v609 = vsel %vm524, %v608, %v584
        %v610 = vsel %vm523, %v418, %v607
        %v611 = vsel %vm523, 0, %v609
        %v612 = vcosq.f32.pop %v610
        %v613 = vsinq.f32.pop %v610
        %vm614 = vweird.f32 %v418
        %v615 = vand.u32 %v611, 3
        %vm616 = vcmp.lt.s32.totalorder %v615, 2
        %vm617 = vcmp.eq.s32.totalorder %v615, 0
        %v618 = vxor.u32 %v613, 2147483648
        %v619 = vsel %vm617, %v612, %v618
        %vm620 = vcmp.eq.s32.totalorder %v615, 2
        %v621 = vxor.u32 %v612, 2147483648
        %v622 = vsel %vm620, %v621, %v613
        %v623 = vsel %vm616, %v619, %v622
        %v624 = vsel %vm614, nan, %v623
        %v625 = vmul.f32 %v414, %v521
        %v626 = vmul.f32 %v416, %v624
        %v627 = vand.u32 2147483647, %v417
        %vm628 = vcmp.le.f32.partialorder %v627, 0.7853982
        %vm629 = vcmp.lt.s32.totalorder %v417, 0
        %v630 = vand.u32 %v417, 2139095040
        %v631 = vshrl.u32 %v630, 23
        %v632 = vsub.s32 %v631, 127
        %v633 = vand.u32 2147483647, %v417
        %v634 = vand.u32 %v633, 8388607
        %v635 = vor.u32 %v634, 8388608
        %v636 = vsub.s32 0, %v635
        %v637 = vadd.s32 %v632, 1
        %vm638 = vcmp.gt.s32.totalorder %v637, 0
        %v639 = vsel %vm638, %v637, 0
        %v640 = vshrl.u32 %v639, 5
        %v641 = vand.u32 %v639, 31
        %v642 = vsub.s32 32, %v641
        %v643 = vshrl.u32 683565275, %v642
        %v644 = vshll.u32 683565275, %v641
        %v645 = vshrl.u32 2475754826, %v642
        %v646 = vor.u32 %v644, %v645
        %v647 = vshll.u32 2475754826, %v641
        %v648 = vshrl.u32 2131351028, %v642
        %v649 = vor.u32 %v647, %v648
        %v650 = vshll.u32 2131351028, %v641
        %v651 = vshrl.u32 2102212464, %v642
        %v652 = vor.u32 %v650, %v651
        %v653 = vshll.u32 2102212464, %v641
        %v654 = vshrl.u32 920167782, %v642
        %v655 = vor.u32 %v653, %v654
        %v656 = vshll.u32 920167782, %v641
        %v657 = vshrl.u32 1326507024, %v642
        %v658 = vor.u32 %v656, %v657
        %vm659 = vcmp.lt.s32.totalorder %v640, 1
        %vm660 = vcmp.lt.s32.totalorder %v640, 2
        %vm661 = vcmp.lt.s32.totalorder %v640, 3
        %vm662 = vcmp.lt.s32.totalorder %v640, 4
        %v663 = vsel %vm659, %v643, %v646
        %v664 = vsel %vm662, %v652, 2102212464
        %v665 = vsel %vm661, %v649, %v664
        %v666 = vsel %vm660, %v663, %v665
        %v667 = vsel %vm659, %v646, %v649
        %v668 = vsel %vm662, %v655, 920167782
        %v669 = vsel %vm661, %v652, %v668
        %v670 = vsel %vm660, %v667, %v669
        %v671 = vsel %vm659, %v649, %v652
        %v672 = vsel %vm662, %v658, 1326507024
        %v673 = vsel %vm661, %v655, %v672
        %v674 = vsel %vm660, %v671, %v673
        %v675 = vshll.u32 %v635, 8
        %v676 = vmul.u32.u64.compose %v675, %v674
        %v677 = vextract.low.u32 %v676
        %v678 = vextract.high.u32 %v676
        %v679 = vmul.u32.u64.compose %v675, %v670
        %v680 = vextract.low.u32 %v679
        %v681 = vextract.high.u32 %v679
        %v682 = vmul.u32 %v675, %v666
        %v683 = vadd.s32 %v678, %v680
        %vm684 = vc.u32 %v678, %v680
        %v685 = vadd.s32 %v681, 1
        %v686 = vsel %vm684, %v685, %v681
        %v687 = vadd.s32 %v682, %v686
        %v688 = vadd.s32 %v687, 536870912
        %v689 = vshrl.u32 %v688, 30
        %v690 = vshll.u32 %v689, 30
        %v691 = vsub.s32 %v687, %v690
        %vm692 = vcmp.lt.s32.totalorder %v691, 0
        %v693 = vsub.s32 0, %v691
        %v694 = vsel %vm692, %v693, %v691
        %v695 = vclz %v694
        %v696 = vsub.s32 %v695, 2
        %vm697 = vcmp.gt.s32.totalorder 0, %v696
        %v698 = vsel %vm697, 0, %v696
        %v699 = vsub.s32 32, %v698
        %v700 = vshll.u32 %v691, %v698
        %v701 = vshrl.u32 %v683, %v699
        %v702 = vor.u32 %v700, %v701
        %v703 = vsub.s32 4294967266, %v698
        %v704 = vadd.s32 %v703, 127
        %v705 = vshll.u32 %v704, 23
        %v706 = vor.u32 4788187, %v705
        %v707 = vand.u32 2147483647, %v706
        %v709 = vcvt.s32.f32 %v702
        %v710 = vmul.f32 %v709, %v707
        %v711 = vxor.u32 %v710, 2147483648
        %v712 = vsel %vm629, %v711, %v710
        %v713 = vsub.s32 4, %v689
        %v714 = vsel %vm629, %v713, %v689
        %v715 = vsel %vm628, %v417, %v712
        %v716 = vsel %vm628, 0, %v714
        %v717 = vcosq.f32.pop %v715
        %v718 = vsinq.f32.pop %v715
        %vm719 = vweird.f32 %v417
        %v720 = vadd.s32 %v716, 3
        %v721 = vand.u32 %v720, 3
        %vm722 = vcmp.lt.s32.totalorder %v721, 2
        %vm723 = vcmp.eq.s32.totalorder %v721, 0
        %v724 = vxor.u32 %v718, 2147483648
        %v725 = vsel %vm723, %v717, %v724
        %vm726 = vcmp.eq.s32.totalorder %v721, 2
        %v727 = vxor.u32 %v717, 2147483648
        %v728 = vsel %vm726, %v727, %v718
        %v729 = vsel %vm722, %v725, %v728
        %v730 = vsel %vm719, nan, %v729
        %v731 = vand.u32 2147483647, %v418
        %vm732 = vcmp.le.f32.partialorder %v731, 0.7853982
        %vm733 = vcmp.lt.s32.totalorder %v418, 0
        %v734 = vand.u32 %v418, 2139095040
        %v735 = vshrl.u32 %v734, 23
        %v736 = vsub.s32 %v735, 127
        %v737 = vand.u32 2147483647, %v418
        %v738 = vand.u32 %v737, 8388607
        %v739 = vor.u32 %v738, 8388608
        %v740 = vsub.s32 0, %v739
        %v741 = vadd.s32 %v736, 1
        %vm742 = vcmp.gt.s32.totalorder %v741, 0
        %v743 = vsel %vm742, %v741, 0
        %v744 = vshrl.u32 %v743, 5
        %v745 = vand.u32 %v743, 31
        %v746 = vsub.s32 32, %v745
        %v747 = vshrl.u32 683565275, %v746
        %v748 = vshll.u32 683565275, %v745
        %v749 = vshrl.u32 2475754826, %v746
        %v750 = vor.u32 %v748, %v749
        %v751 = vshll.u32 2475754826, %v745
        %v752 = vshrl.u32 2131351028, %v746
        %v753 = vor.u32 %v751, %v752
        %v754 = vshll.u32 2131351028, %v745
        %v755 = vshrl.u32 2102212464, %v746
        %v756 = vor.u32 %v754, %v755
        %v757 = vshll.u32 2102212464, %v745
        %v758 = vshrl.u32 920167782, %v746
        %v759 = vor.u32 %v757, %v758
        %v760 = vshll.u32 920167782, %v745
        %v761 = vshrl.u32 1326507024, %v746
        %v762 = vor.u32 %v760, %v761
        %vm763 = vcmp.lt.s32.totalorder %v744, 1
        %vm764 = vcmp.lt.s32.totalorder %v744, 2
        %vm765 = vcmp.lt.s32.totalorder %v744, 3
        %vm766 = vcmp.lt.s32.totalorder %v744, 4
        %v767 = vsel %vm763, %v747, %v750
        %v768 = vsel %vm766, %v756, 2102212464
        %v769 = vsel %vm765, %v753, %v768
        %v770 = vsel %vm764, %v767, %v769
        %v771 = vsel %vm763, %v750, %v753
        %v772 = vsel %vm766, %v759, 920167782
        %v773 = vsel %vm765, %v756, %v772
        %v774 = vsel %vm764, %v771, %v773
        %v775 = vsel %vm763, %v753, %v756
        %v776 = vsel %vm766, %v762, 1326507024
        %v777 = vsel %vm765, %v759, %v776
        %v778 = vsel %vm764, %v775, %v777
        %v779 = vshll.u32 %v739, 8
        %v780 = vmul.u32.u64.compose %v779, %v778
        %v781 = vextract.low.u32 %v780
        %v782 = vextract.high.u32 %v780
        %v783 = vmul.u32.u64.compose %v779, %v774
        %v784 = vextract.low.u32 %v783
        %v785 = vextract.high.u32 %v783
        %v786 = vmul.u32 %v779, %v770
        %v787 = vadd.s32 %v782, %v784
        %vm788 = vc.u32 %v782, %v784
        %v789 = vadd.s32 %v785, 1
        %v790 = vsel %vm788, %v789, %v785
        %v791 = vadd.s32 %v786, %v790
        %v792 = vadd.s32 %v791, 536870912
        %v793 = vshrl.u32 %v792, 30
        %v794 = vshll.u32 %v793, 30
        %v795 = vsub.s32 %v791, %v794
        %vm796 = vcmp.lt.s32.totalorder %v795, 0
        %v797 = vsub.s32 0, %v795
        %v798 = vsel %vm796, %v797, %v795
        %v799 = vclz %v798
        %v800 = vsub.s32 %v799, 2
        %vm801 = vcmp.gt.s32.totalorder 0, %v800
        %v802 = vsel %vm801, 0, %v800
        %v803 = vsub.s32 32, %v802
        %v804 = vshll.u32 %v795, %v802
        %v805 = vshrl.u32 %v787, %v803
        %v806 = vor.u32 %v804, %v805
        %v807 = vsub.s32 4294967266, %v802
        %v808 = vadd.s32 %v807, 127
        %v809 = vshll.u32 %v808, 23
        %v810 = vor.u32 4788187, %v809
        %v811 = vand.u32 2147483647, %v810
        %v813 = vcvt.s32.f32 %v806
        %v814 = vmul.f32 %v813, %v811
        %v815 = vxor.u32 %v814, 2147483648
        %v816 = vsel %vm733, %v815, %v814
        %v817 = vsub.s32 4, %v793
        %v818 = vsel %vm733, %v817, %v793
        %v819 = vsel %vm732, %v418, %v816
        %v820 = vsel %vm732, 0, %v818
        %v821 = vcosq.f32.pop %v819
        %v822 = vsinq.f32.pop %v819
        %vm823 = vweird.f32 %v418
        %v824 = vadd.s32 %v820, 3
        %v825 = vand.u32 %v824, 3
        %vm826 = vcmp.lt.s32.totalorder %v825, 2
        %vm827 = vcmp.eq.s32.totalorder %v825, 0
        %v828 = vxor.u32 %v822, 2147483648
        %v829 = vsel %vm827, %v821, %v828
        %vm830 = vcmp.eq.s32.totalorder %v825, 2
        %v831 = vxor.u32 %v821, 2147483648
        %v832 = vsel %vm830, %v831, %v822
        %v833 = vsel %vm826, %v829, %v832
        %v834 = vsel %vm823, nan, %v833
        %v835 = vmul.f32 %v414, %v730
        %v836 = vmul.f32 %v416, %v834
        %v837 = vld [vmem:[#allocation8] sm:$0xff]
        %v838 = vld [vmem:[#allocation8 + $0x8] sm:$0xff]
        %v839 = vld [vmem:[#allocation8 + $0x10] sm:$0xff]
        %v840 = vld [vmem:[#allocation8 + $0x18] sm:$0xff]
        %v841 = vld [vmem:[#allocation8 + $0x20] sm:$0xff]
        %v842 = vld [vmem:[#allocation8 + $0x28] sm:$0xff]
        %v843 = vld [vmem:[#allocation8 + $0x30] sm:$0xff]
        %v844 = vld [vmem:[#allocation8 + $0x38] sm:$0xff]
        %v845 = vld [vmem:[#allocation8 + $0x40] sm:$0xff]
        %v846 = vld [vmem:[#allocation8 + $0x48] sm:$0xff]
        %v847 = vld [vmem:[#allocation8 + $0x50] sm:$0xff]
        %v848 = vld [vmem:[#allocation8 + $0x58] sm:$0xff]
        %v849 = vld [vmem:[#allocation8 + $0x60] sm:$0xff]
        %v850 = vld [vmem:[#allocation8 + $0x68] sm:$0xff]
        %v851 = vld [vmem:[#allocation8 + $0x70] sm:$0xff]
        %v852 = vld [vmem:[#allocation8 + $0x78] sm:$0xff]
        %v853 = vld [vmem:[#allocation8 + $0x80] sm:$0xff]
        %v854 = vld [vmem:[#allocation8 + $0x88] sm:$0xff]
        %v855 = vld [vmem:[#allocation10] sm:$0xff]
        %v856 = vld [vmem:[#allocation10 + $0x8] sm:$0xff]
        %v857 = vld [vmem:[#allocation10 + $0x10] sm:$0xff]
        %v858 = vld [vmem:[#allocation10 + $0x18] sm:$0xff]
        %v859 = vld [vmem:[#allocation10 + $0x20] sm:$0xff]
        %v860 = vld [vmem:[#allocation10 + $0x28] sm:$0xff]
        %v861 = vld [vmem:[#allocation10 + $0x30] sm:$0xff]
        %v862 = vld [vmem:[#allocation10 + $0x38] sm:$0xff]
        %v863 = vld [vmem:[#allocation10 + $0x40] sm:$0xff]
        %v864 = vld [vmem:[#allocation10 + $0x48] sm:$0xff]
        %v865 = vld [vmem:[#allocation10 + $0x50] sm:$0xff]
        %v866 = vld [vmem:[#allocation10 + $0x58] sm:$0xff]
        %v867 = vld [vmem:[#allocation10 + $0x60] sm:$0xff]
        %v868 = vld [vmem:[#allocation10 + $0x68] sm:$0xff]
        %v869 = vld [vmem:[#allocation10 + $0x70] sm:$0xff]
        %v870 = vld [vmem:[#allocation10 + $0x78] sm:$0xff]
        %v871 = vld [vmem:[#allocation10 + $0x80] sm:$0xff]
        %v872 = vld [vmem:[#allocation10 + $0x88] sm:$0xff]
        %vm873 = vcmask 130048
        %v875 = vsel %vm873, %v836, 0
        %877 = vmatprep.subr.mxu0 0.0
        %878 = vmatpush1.msra.mxu0 %v855
        %879 = vmatprep.subr.mxu0 0.0
        %880 = vmatpush1.msra.mxu0 %v856
        %881 = vmatprep.subr.mxu0 0.0
        %882 = vmatpush1.msra.mxu0 %v857
        %883 = vmatprep.subr.mxu0 0.0
        %884 = vmatpush1.msra.mxu0 %v858
        %885 = vmatprep.subr.mxu0 0.0
        %886 = vmatpush1.msra.mxu0 %v859
        %887 = vmatprep.subr.mxu0 0.0
        %888 = vmatpush1.msra.mxu0 %v860
        %889 = vmatprep.subr.mxu0 0.0
        %890 = vmatpush1.msra.mxu0 %v861
        %891 = vmatprep.subr.mxu0 0.0
        %892 = vmatpush1.msra.mxu0 %v862
        %893 = vmatprep.subr.mxu0 0.0
        %894 = vmatpush1.msra.mxu0 %v863
        %895 = vmatprep.subr.mxu0 0.0
        %896 = vmatpush1.msra.mxu0 %v864
        %897 = vmatprep.subr.mxu0 0.0
        %898 = vmatpush1.msra.mxu0 %v865
        %899 = vmatprep.subr.mxu0 0.0
        %900 = vmatpush1.msra.mxu0 %v866
        %901 = vmatprep.subr.mxu0 0.0
        %902 = vmatpush1.msra.mxu0 %v867
        %903 = vmatprep.subr.mxu0 0.0
        %904 = vmatpush1.msra.mxu0 %v868
        %905 = vmatprep.subr.mxu0 0.0
        %906 = vmatpush1.msra.mxu0 %v869
        %907 = vmatprep.subr.mxu0 0.0
        %908 = vmatpush1.msra.mxu0 %v870
        %909 = vmatprep.subr.mxu0 0.0
        %910 = vmatpush1.msra.mxu0 %v871
        %911 = vmatprep.subr.mxu0 0.0
        %912 = vmatpush1.msra.mxu0 %v872
        %913 = vmatprep.subr.mxu0 0.0
        %914 = vmatpush1.msra.mxu0 0.0
        %915 = vmatprep.subr.mxu0 0.0
        %916 = vmatpush1.msra.mxu0 0.0
        %917 = vmatprep.subr.mxu0 0.0
        %918 = vmatpush1.msra.mxu0 0.0
        %919 = vmatprep.subr.mxu0 0.0
        %920 = vmatpush1.msra.mxu0 0.0
        %921 = vmatprep.subr.mxu0 0.0
        %922 = vmatpush1.msra.mxu0 0.0
        %923 = vmatprep.subr.mxu0 0.0
        %924 = vmatpush1.msra.mxu0 0.0
        %925 = vmatprep.subr.mxu0 0.0
        %926 = vmatpush1.msra.mxu0 0.0
        %927 = vmatprep.subr.mxu0 0.0
        %928 = vmatpush1.msra.mxu0 0.0
        %929 = vmatprep.subr.mxu0 0.0
        %930 = vmatpush1.msra.mxu0 0.0
        %931 = vmatprep.subr.mxu0 0.0
        %932 = vmatpush1.msra.mxu0 0.0
        %933 = vmatprep.subr.mxu0 0.0
        %934 = vmatpush1.msra.mxu0 0.0
        %935 = vmatprep.subr.mxu0 0.0
        %936 = vmatpush1.msra.mxu0 0.0
        %937 = vmatprep.subr.mxu0 0.0
        %938 = vmatpush1.msra.mxu0 0.0
        %939 = vmatprep.subr.mxu0 0.0
        %940 = vmatpush1.msra.mxu0 0.0
        %941 = vmatprep.mubr.f32.mxu0 %v875
        %942 = vmatmul.mubr.f32.gmra.mrb[0].mxu0 %v835
        %v943 = vpop.f32.mrb[0].mxu0
        %v944 = vadd.f32 0.0, %v943
        %v945 = vpop.f32.mrb[0].mxu0
        %946 = vdwg.mxu0
        %v948 = vsel %vm873, %v626, 0
        %950 = vmatprep.subr.mxu0 0.0
        %951 = vmatpush1.msra.mxu0 %v837
        %952 = vmatprep.subr.mxu0 0.0
        %953 = vmatpush1.msra.mxu0 %v838
        %954 = vmatprep.subr.mxu0 0.0
        %955 = vmatpush1.msra.mxu0 %v839
        %956 = vmatprep.subr.mxu0 0.0
        %957 = vmatpush1.msra.mxu0 %v840
        %958 = vmatprep.subr.mxu0 0.0
        %959 = vmatpush1.msra.mxu0 %v841
        %960 = vmatprep.subr.mxu0 0.0
        %961 = vmatpush1.msra.mxu0 %v842
        %962 = vmatprep.subr.mxu0 0.0
        %963 = vmatpush1.msra.mxu0 %v843
        %964 = vmatprep.subr.mxu0 0.0
        %965 = vmatpush1.msra.mxu0 %v844
        %966 = vmatprep.subr.mxu0 0.0
        %967 = vmatpush1.msra.mxu0 %v845
        %968 = vmatprep.subr.mxu0 0.0
        %969 = vmatpush1.msra.mxu0 %v846
        %970 = vmatprep.subr.mxu0 0.0
        %971 = vmatpush1.msra.mxu0 %v847
        %972 = vmatprep.subr.mxu0 0.0
        %973 = vmatpush1.msra.mxu0 %v848
        %974 = vmatprep.subr.mxu0 0.0
        %975 = vmatpush1.msra.mxu0 %v849
        %976 = vmatprep.subr.mxu0 0.0
        %977 = vmatpush1.msra.mxu0 %v850
        %978 = vmatprep.subr.mxu0 0.0
        %979 = vmatpush1.msra.mxu0 %v851
        %980 = vmatprep.subr.mxu0 0.0
        %981 = vmatpush1.msra.mxu0 %v852
        %982 = vmatprep.subr.mxu0 0.0
        %983 = vmatpush1.msra.mxu0 %v853
        %984 = vmatprep.subr.mxu0 0.0
        %985 = vmatpush1.msra.mxu0 %v854
        %986 = vmatprep.subr.mxu0 0.0
        %987 = vmatpush1.msra.mxu0 0.0
        %988 = vmatprep.subr.mxu0 0.0
        %989 = vmatpush1.msra.mxu0 0.0
        %990 = vmatprep.subr.mxu0 0.0
        %991 = vmatpush1.msra.mxu0 0.0
        %992 = vmatprep.subr.mxu0 0.0
        %993 = vmatpush1.msra.mxu0 0.0
        %994 = vmatprep.subr.mxu0 0.0
        %995 = vmatpush1.msra.mxu0 0.0
        %996 = vmatprep.subr.mxu0 0.0
        %997 = vmatpush1.msra.mxu0 0.0
        %998 = vmatprep.subr.mxu0 0.0
        %999 = vmatpush1.msra.mxu0 0.0
        %1000 = vmatprep.subr.mxu0 0.0
        %1001 = vmatpush1.msra.mxu0 0.0
        %1002 = vmatprep.subr.mxu0 0.0
        %1003 = vmatpush1.msra.mxu0 0.0
        %1004 = vmatprep.subr.mxu0 0.0
        %1005 = vmatpush1.msra.mxu0 0.0
        %1006 = vmatprep.subr.mxu0 0.0
        %1007 = vmatpush1.msra.mxu0 0.0
        %1008 = vmatprep.subr.mxu0 0.0
        %1009 = vmatpush1.msra.mxu0 0.0
        %1010 = vmatprep.subr.mxu0 0.0
        %1011 = vmatpush1.msra.mxu0 0.0
        %1012 = vmatprep.subr.mxu0 0.0
        %1013 = vmatpush1.msra.mxu0 0.0
        %1014 = vmatprep.mubr.f32.mxu0 %v948
        %1015 = vmatmul.mubr.f32.gmra.mrb[0].mxu0 %v625
        %v1016 = vpop.f32.mrb[0].mxu0
        %v1017 = vadd.f32 %v944, %v1016
        %v1018 = vpop.f32.mrb[0].mxu0
        %1019 = vdwg.mxu0
        %1020 = vst [vmem:[%s320] sm:$0xff] %v1017
        %s1021 = sand.u32 %s149, 1
        %s1022 = scalar_lea.sflag [#allocation4], %s1021
        %s1023 = sand.u32 %s149, 1
        %s1024 = smul.addr %s1023, 8
        %s1025 = scalar_lea.vmem [#allocation11], %s1024
        // Predicated region
        $region61: #{tpu_custom_call.1} parent=39 // pred_check
          %p1026 = pneg %p159
        $region62: #{tpu_custom_call.1} parent=39 // pred_check_branch
          %1028 = sbr.rel (%p1026) target = $region64
        $region63: #{tpu_custom_call.1} parent=39 // pred_region
          %s1030 = ssub.s32 128, 128
          %1031 = vsyncadd %s1022, %s1030
          %s1032 = smul.addr %s26, 128
          %s1033 = scalar_lea.hbm %s5, %s1032
          %s1035 = sshll.u32 %s1025, 4
          %s1036 = int_to_ptr.vmem [resolvable:$true] %s1035
          %1038 = dma.vmem_to_hbm [thread:$0]  %s1036, 128, %s1033, %s1022
        $region64: #{tpu_custom_call.1} parent=39 // pred_fallthru
          _
      $region40: #{tpu_custom_call.1} parent=5 // pred_fallthru
        _
      %p1039 = scmp.le.s32.totalorder 2, %s21
      // Predicated region
      $region65: #{tpu_custom_call.1} parent=5 // pred_check
        %p1040 = pneg %p1039
      $region66: #{tpu_custom_call.1} parent=5 // pred_check_branch
        %1042 = sbr.rel (%p1040) target = $region68
      $region67: #{tpu_custom_call.1} parent=5 // pred_region
        %s1043 = ssub.s32 %s21, 2
        // Predicated region
        $region69: #{tpu_custom_call.1} parent=67 // pred_check
          %p1044 = pneg %p165
        $region70: #{tpu_custom_call.1} parent=67 // pred_check_branch
          %1046 = sbr.rel (%p1044) target = $region72
        $region71: #{tpu_custom_call.1} parent=67 // pred_region
          %s1047 = sand.u32 %s150, 1
          %s1048 = scalar_lea.sflag [#allocation4], %s1047
          %s1049 = sand.u32 %s150, 1
          %s1050 = smul.addr %s1049, 8
          %s1051 = scalar_lea.vmem [#allocation11], %s1050
          %1052 = dma.done %s1048, 128
        $region72: #{tpu_custom_call.1} parent=67 // pred_fallthru
          _
      $region68: #{tpu_custom_call.1} parent=5 // pred_fallthru
        _
    $region6: #{tpu_custom_call.1} parent=1 // loop_footer
      %s25 = sadd.s32 1, %s21
    $region7: #{tpu_custom_call.1} parent=1 // loop_footer_branch
      %20 = sbr.rel target = $region3
    $region8: #{tpu_custom_call.1} parent=1 // loop_exit
      _
    %1053 = vsyncpa [#allocation3], 1
    %s1054 = scalar_lea.sflag [#allocation3], 1
    %1055 = vsyncpa %s1054, 1
    %1056 = vsyncpa [#allocation6], 1
    %s1057 = scalar_lea.sflag [#allocation6], 1
    %1058 = vsyncpa %s1057, 1
    %1059 = vsyncpa [#allocation9], 1
    %1060 = vsyncpa [#allocation4], 1
    %s1061 = scalar_lea.sflag [#allocation4], 1
    %1062 = vsyncpa %s1061, 1

</llo_original>
